<compile_context>
chip_gen: v6e
topology: v6e:2x2x1
jax: 0.10.0
libtpu: 0.0.40
codegen_flags: <defaults>
</compile_context>

<pallas_src>
import jax
import jax.numpy as jnp
from jax.experimental import pallas as pl
from jax.experimental.pallas import tpu as pltpu


def _round_up(x, m):
    return ((x + m - 1) // m) * m


def _pad2(a, rows, cols, dtype=jnp.float32):
    a = jnp.asarray(a, jnp.float32)
    a = jnp.pad(a, ((0, rows - a.shape[0]), (0, cols - a.shape[1])))
    return a.astype(dtype)


def _leaky(h):
    # PyTorch nn.LeakyReLU default negative_slope = 0.01
    return jnp.where(h > 0, h, 0.01 * h)


def _use_wide_mxu():
    """True on chips with a 256-wide MXU (v6e / v7x); False on v2-v5 (128x128 MXU tiles)."""
    try:
        kind = jax.devices()[0].device_kind.lower()
    except Exception:
        return True
    return not any(v in kind for v in ("v2", "v3", "v4", "v5"))


def _block_diag(Wa, Wb, rows, cols, dtype):
    """blockdiag(pad(Wa), pad(Wb)) of shape (2*rows, 2*cols)."""
    top = jnp.concatenate([_pad2(Wa, rows, cols), jnp.zeros((rows, cols), jnp.float32)], axis=1)
    bot = jnp.concatenate([jnp.zeros((rows, cols), jnp.float32), _pad2(Wb, rows, cols)], axis=1)
    return jnp.concatenate([top, bot], axis=0).astype(dtype)


def _make_flow_kernel(n_hidden, dim1, dim2, dim1_pad, dim2_pad, hidden_pad,
                      fuse_st, use_perm_matmul):
    """Build the fused ActNorm + double-coupling (+Shuffle) kernel (closure over static dims)."""
    f32 = jnp.float32
    bf16 = jnp.bfloat16
    n_per_step = (2 * n_hidden + 4) if fuse_st else (4 * n_hidden + 6)

    def coupling(xa, xb, prm):
        # Layer 0 of the s-net and t-net share the same LHS -> one wide MXU matmul.
        w0, b0 = prm[0], prm[1]
        h = _leaky(jnp.dot(xa.astype(bf16), w0[...], preferred_element_type=f32) + b0[...])
        if fuse_st:
            # s / t chains fused into 256-wide block-diagonal matmuls (v6e / v7x MXU width).
            for l in range(n_hidden):
                w, b = prm[2 + 2 * l], prm[3 + 2 * l]
                h = _leaky(jnp.dot(h.astype(bf16), w[...], preferred_element_type=f32) + b[...])
            wl, bl = prm[2 + 2 * n_hidden], prm[3 + 2 * n_hidden]
            st = jnp.dot(h.astype(bf16), wl[...], preferred_element_type=f32) + bl[...]
            scale = jnp.tanh(st[:, :dim2_pad])
            t = st[:, dim2_pad:]
        else:
            hs = h[:, :hidden_pad]
            ht = h[:, hidden_pad:]
            off_s = 2
            off_t = 2 + 2 * (n_hidden + 1)
            # Interleave the two independent chains layer by layer (keeps the MXU busy on v5e).
            for l in range(n_hidden):
                sw, sb = prm[off_s + 2 * l], prm[off_s + 2 * l + 1]
                tw, tb = prm[off_t + 2 * l], prm[off_t + 2 * l + 1]
                hs = _leaky(jnp.dot(hs.astype(bf16), sw[...], preferred_element_type=f32) + sb[...])
                ht = _leaky(jnp.dot(ht.astype(bf16), tw[...], preferred_element_type=f32) + tb[...])
            sw, sb = prm[off_s + 2 * n_hidden], prm[off_s + 2 * n_hidden + 1]
            tw, tb = prm[off_t + 2 * n_hidden], prm[off_t + 2 * n_hidden + 1]
            scale = jnp.tanh(jnp.dot(hs.astype(bf16), sw[...], preferred_element_type=f32) + sb[...])
            t = jnp.dot(ht.astype(bf16), tw[...], preferred_element_type=f32) + tb[...]
        xb_new = xb * jnp.exp(scale) + t
        # Padded columns of `scale` are tanh(0) = 0, so the lane reduction is exact.
        ld = jnp.sum(scale, axis=1, keepdims=True)
        return xb_new, ld

    def kernel(*refs):
        xa_ref, xb_ref = refs[0], refs[1]
        an_sc_a, an_lo_a, an_sc_b, an_lo_b = refs[2:6]
        p = 6
        step0 = refs[p:p + n_per_step]
        step1 = refs[p + n_per_step:p + 2 * n_per_step]
        p += 2 * n_per_step
        if use_perm_matmul:
            perm_ref = refs[p]
            y_ref, ld_ref = refs[p + 1], refs[p + 2]
        else:
            xa_out_ref, xb_out_ref, ld_ref = refs[p], refs[p + 1], refs[p + 2]

        xa = xa_ref[...].astype(f32)
        xb = xb_ref[...].astype(f32)

        # --- ActNorm: h = scale * (x + loc) (per channel; padded channels stay exactly 0) ---
        xa = an_sc_a[...] * (xa + an_lo_a[...])
        xb = an_sc_b[...] * (xb + an_lo_b[...])

        # --- coupling step 0 ---
        xb1, ld0 = coupling(xa, xb, step0)

        # --- channel swap between steps: x <- cat(chunk(x, 2)[::-1]) then re-chunk ---
        if dim1 == dim2:
            xa2, xb2 = xb1, xa
        else:
            extra = dim1 - dim2  # == 1 for odd channel counts
            rows = xa.shape[0]
            xa2_parts = [xb1[:, :dim2], xa[:, :extra]]
            if dim1_pad - dim1 > 0:
                xa2_parts.append(jnp.zeros((rows, dim1_pad - dim1), f32))
            xa2 = jnp.concatenate(xa2_parts, axis=1)
            xb2_parts = [xa[:, extra:dim1]]
            if dim2_pad - dim2 > 0:
                xb2_parts.append(jnp.zeros((rows, dim2_pad - dim2), f32))
            xb2 = jnp.concatenate(xb2_parts, axis=1)

        # --- coupling step 1 ---
        xb3, ld1 = coupling(xa2, xb2, step1)

        if use_perm_matmul:
            # cat + Shuffle (fixed permutation) fused as a 0/1 matmul: one lane-dense output,
            # no post-kernel concat/gather HBM round trip.
            comb = jnp.concatenate([xa2, xb3], axis=1)
            y_ref[...] = jnp.dot(comb, perm_ref[...],
                                 preferred_element_type=f32).astype(y_ref.dtype)
        else:
            xa_out_ref[...] = xa2.astype(xa_out_ref.dtype)
            xb_out_ref[...] = xb3.astype(xb_out_ref.dtype)
        # Lane-dense logdet store; the wrapper reads column 0.
        ld_ref[...] = jnp.broadcast_to(ld0 + ld1, ld_ref.shape)

    return kernel, n_per_step


def _pack_net_params(params, dim1_pad, dim2_pad, hidden_pad, n_hidden, fuse_st):
    """Zero-pad and order the coupling-net weights to match the kernel's ref layout.

    Weights are stored in bfloat16 (MXU-native rate, half the DMA/VMEM bytes); biases stay
    float32 because they are added after the f32 accumulation on the VPU.
    """
    wdt = jnp.bfloat16
    ops = []
    for i in range(2):
        s_net, t_net = params["s"][i], params["t"][i]
        Ws0, bs0 = s_net[0]
        Wt0, bt0 = t_net[0]
        # Fused layer-0 weights/biases: [W0_s | W0_t] along out-features (shared LHS).
        ops.append(jnp.concatenate([_pad2(Ws0, dim1_pad, hidden_pad),
                                    _pad2(Wt0, dim1_pad, hidden_pad)], axis=1).astype(wdt))
        ops.append(jnp.concatenate([_pad2(bs0[None, :], 1, hidden_pad),
                                    _pad2(bt0[None, :], 1, hidden_pad)], axis=1))
        if fuse_st:
            for l in range(1, n_hidden + 1):
                Ws, bs = s_net[l]
                Wt, bt = t_net[l]
                ops.append(_block_diag(Ws, Wt, hidden_pad, hidden_pad, wdt))
                ops.append(jnp.concatenate([_pad2(bs[None, :], 1, hidden_pad),
                                            _pad2(bt[None, :], 1, hidden_pad)], axis=1))
            Ws, bs = s_net[-1]
            Wt, bt = t_net[-1]
            ops.append(_block_diag(Ws, Wt, hidden_pad, dim2_pad, wdt))
            ops.append(jnp.concatenate([_pad2(bs[None, :], 1, dim2_pad),
                                        _pad2(bt[None, :], 1, dim2_pad)], axis=1))
        else:
            for net in (s_net, t_net):
                for l in range(1, n_hidden + 1):
                    W, b = net[l]
                    ops += [_pad2(W, hidden_pad, hidden_pad, wdt), _pad2(b[None, :], 1, hidden_pad)]
                W, b = net[-1]
                ops += [_pad2(W, hidden_pad, dim2_pad, wdt), _pad2(b[None, :], 1, dim2_pad)]
    return ops


def _flow_block_forward(x, params):
    """Forward (reverse=False) of UnconditionalFlatDoubleCouplingFlowBlock.

    x: (B, C, 1, 1) float -> (y (B, C, 1, 1) float32, logdet (B,) float32)
    """
    assert x.ndim == 4 and x.shape[2] == 1 and x.shape[3] == 1
    B, C = x.shape[0], x.shape[1]
    assert C >= 2
    dim1 = C // 2 + C % 2
    dim2 = C // 2
    n_hidden = len(params["s"][0]) - 2            # == hidden_depth
    hidden_dim = params["s"][0][0][0].shape[1]

    # Lane/sublane-aligned padded sizes.
    dim1_pad = _round_up(dim1, 128)
    dim2_pad = _round_up(dim2, 128)
    hidden_pad = _round_up(hidden_dim, 128)
    C_pad = _round_up(C, 128)

    # v6e/v7x (256-wide MXU): fuse the two 128-wide s/t chains into 256-wide block-diag matmuls.
    fuse_st = (hidden_pad == 128 and dim2_pad == 128 and _use_wide_mxu())
    # Apply the fixed Shuffle permutation inside the kernel as a 0/1 matmul when it is small.
    use_perm_matmul = (dim1_pad + dim2_pad) <= 1024

    # Batch tiling: big tiles amortize per-grid-step overhead; >= 2 tiles lets the "parallel"
    # axis shard across the two TensorCores on v7x. Tiles are multiples of 16 (bf16 sublanes).
    if B > 32:
        tile_b = min(512, _round_up(pl.cdiv(B, 2), 16))
    else:
        tile_b = _round_up(max(B, 1), 16)
    b_pad = _round_up(B, tile_b)
    num_tiles = b_pad // tile_b

    io_dtype = x.dtype if jnp.issubdtype(x.dtype, jnp.floating) else jnp.float32
    x2 = x.reshape(B, C)
    xa = _pad2(x2[:, :dim1], b_pad, dim1_pad, io_dtype)
    xb = _pad2(x2[:, dim1:], b_pad, dim2_pad, io_dtype)

    an_scale = params["actnorm_scale"].astype(jnp.float32)
    an_loc = params["actnorm_loc"].astype(jnp.float32)
    an_ops = [_pad2(an_scale[:dim1][None, :], 1, dim1_pad),
              _pad2(an_loc[:dim1][None, :], 1, dim1_pad),
              _pad2(an_scale[dim1:][None, :], 1, dim2_pad),
              _pad2(an_loc[dim1:][None, :], 1, dim2_pad)]

    net_ops = _pack_net_params(params, dim1_pad, dim2_pad, hidden_pad, n_hidden, fuse_st)

    kernel, n_per_step = _make_flow_kernel(
        n_hidden, dim1, dim2, dim1_pad, dim2_pad, hidden_pad, fuse_st, use_perm_matmul)
    assert len(net_ops) == 2 * n_per_step

    perm_ops = []
    if use_perm_matmul:
        perm = jnp.asarray(params["perm"], jnp.int32)
        # Source column of output channel d in the concatenated [xa2 | xb3] padded layout.
        src = jnp.where(perm < dim1, perm, perm - dim1 + dim1_pad)
        P = jnp.zeros((dim1_pad + dim2_pad, C_pad), jnp.float32)
        P = P.at[src, jnp.arange(C)].set(1.0)
        perm_ops = [P]

    operands = [xa, xb] + an_ops + net_ops + perm_ops
    param_ops = operands[2:]

    param_bytes = sum(int(op.size) * op.dtype.itemsize for op in param_ops)
    # Weights/biases/actnorm/perm stay VMEM-resident via constant index_maps.  Single-buffer
    # them only when the footprint is big enough that double-buffering would hurt (v7x 64 MiB).
    single_buffer_params = param_bytes > (12 << 20)
    if single_buffer_params:
        def _param_spec(shape):
            return pl.BlockSpec(shape, lambda i: (0, 0), pipeline_mode=pl.Buffered(1))
    else:
        def _param_spec(shape):
            return pl.BlockSpec(shape, lambda i: (0, 0))

    in_specs = [pl.BlockSpec((tile_b, dim1_pad), lambda i: (i, 0)),
                pl.BlockSpec((tile_b, dim2_pad), lambda i: (i, 0))]
    in_specs += [_param_spec(op.shape) for op in param_ops]

    if use_perm_matmul:
        out_shape = (jax.ShapeDtypeStruct((b_pad, C_pad), io_dtype),
                     jax.ShapeDtypeStruct((b_pad, 128), jnp.float32))
        out_specs = (pl.BlockSpec((tile_b, C_pad), lambda i: (i, 0)),
                     pl.BlockSpec((tile_b, 128), lambda i: (i, 0)))
        io_aliases = {}
        out_lanes = C_pad
    else:
        out_shape = (jax.ShapeDtypeStruct((b_pad, dim1_pad), io_dtype),
                     jax.ShapeDtypeStruct((b_pad, dim2_pad), io_dtype),
                     jax.ShapeDtypeStruct((b_pad, 128), jnp.float32))
        out_specs = (pl.BlockSpec((tile_b, dim1_pad), lambda i: (i, 0)),
                     pl.BlockSpec((tile_b, dim2_pad), lambda i: (i, 0)),
                     pl.BlockSpec((tile_b, 128), lambda i: (i, 0)))
        io_aliases = {0: 0, 1: 1}
        out_lanes = dim1_pad + dim2_pad

    # VMEM budget: resident params + double-buffered activation tiles + body intermediates +
    # headroom, capped below the physical per-core VMEM (64 MiB v7x, 128 MiB v5e/v6e).
    try:
        phys_vmem = int(pltpu.get_tpu_info().vmem_capacity_bytes)
    except Exception:
        phys_vmem = 64 << 20
    vmem_cap = (phys_vmem * 3) // 4
    itemsize = jnp.dtype(io_dtype).itemsize
    io_bytes = 2 * tile_b * itemsize * (dim1_pad + dim2_pad + out_lanes) + 2 * tile_b * 4 * 128
    body_bytes = tile_b * 4 * (6 * hidden_pad + 2 * (dim1_pad + dim2_pad) + 2 * dim2_pad
                               + (dim1_pad + dim2_pad if use_perm_matmul else 0))
    resident_params = param_bytes * (1 if single_buffer_params else 2)
    vmem_limit = int(min(max(resident_params + io_bytes + body_bytes + (8 << 20), 32 << 20),
                         vmem_cap))

    outs = pl.pallas_call(
        kernel,
        grid=(num_tiles,),
        in_specs=in_specs,
        out_specs=out_specs,
        out_shape=out_shape,
        input_output_aliases=io_aliases,
        compiler_params=pltpu.CompilerParams(
            dimension_semantics=("parallel",),
            vmem_limit_bytes=vmem_limit),
    )(*operands)

    if use_perm_matmul:
        y_out, ld_out = outs
        h = y_out[:B, :C].astype(jnp.float32)
    else:
        xa_out, xb_out, ld_out = outs
        h = jnp.concatenate([xa_out[:B, :dim1].astype(jnp.float32),
                             xb_out[:B, :dim2].astype(jnp.float32)], axis=1)
        h = jnp.take(h, params["perm"], axis=1)

    # ActNorm logdet is data-independent: H*W*sum(log|scale|) with H = W = 1.
    logdet = ld_out[:B, 0] + jnp.sum(jnp.log(jnp.abs(an_scale)))
    return h[:, :, None, None], logdet


flow_block_forward = jax.jit(_flow_block_forward)


def init_params(key, in_channels, hidden_dim, hidden_depth=2):
    """Deterministic synthetic parameters matching the PyTorch module shapes.

    Each BasicFullyConnectedNet(dim=dim1, out_dim=dim2, depth=hidden_depth, hidden_dim=H) has
    (hidden_depth + 2) Linear layers. Weights are stored transposed: (in, out); biases (out,).
    """
    dim1 = in_channels // 2 + in_channels % 2
    dim2 = in_channels // 2
    layer_dims = ([(dim1, hidden_dim)]
                  + [(hidden_dim, hidden_dim)] * hidden_depth
                  + [(hidden_dim, dim2)])

    def make_net(k):
        net = []
        for (din, dout) in layer_dims:
            k, kw, kb = jax.random.split(k, 3)
            bound = 1.0 / float(din) ** 0.5
            W = jax.random.uniform(kw, (din, dout), jnp.float32, -bound, bound)
            b = jax.random.uniform(kb, (dout,), jnp.float32, -bound, bound)
            net.append((W, b))
        return net

    keys = jax.random.split(key, 7)
    return {
        "s": [make_net(keys[0]), make_net(keys[1])],
        "t": [make_net(keys[2]), make_net(keys[3])],
        "actnorm_loc": 0.1 * jax.random.normal(keys[4], (in_channels,), jnp.float32),
        "actnorm_scale": jax.random.uniform(keys[5], (in_channels,), jnp.float32, 0.5, 1.5),
        "perm": jax.random.permutation(keys[6], in_channels),
    }


def reference_forward(x, params):
    """Pure-JAX reference mirroring the PyTorch forward (for self-check)."""
    B, C = x.shape[0], x.shape[1]
    dim1 = C // 2 + C % 2
    h = x.reshape(B, C).astype(jnp.float32)
    an_scale, an_loc = params["actnorm_scale"], params["actnorm_loc"]
    h = an_scale[None, :] * (h + an_loc[None, :])
    logdet = jnp.full((B,), jnp.sum(jnp.log(jnp.abs(an_scale))), jnp.float32)

    def mlp(net, z, use_tanh):
        out = z
        n = len(net)
        for li, (W, b) in enumerate(net):
            out = jnp.dot(out, W, precision=jax.lax.Precision.HIGHEST) + b
            if li < n - 1:
                out = jnp.where(out > 0, out, 0.01 * out)
        return jnp.tanh(out) if use_tanh else out

    for i in range(2):
        if i % 2 != 0:
            h = jnp.concatenate([h[:, dim1:], h[:, :dim1]], axis=1)
        xa, xb = h[:, :dim1], h[:, dim1:]
        scale = mlp(params["s"][i], xa, True)
        t = mlp(params["t"][i], xa, False)
        xb = xb * jnp.exp(scale) + t
        h = jnp.concatenate([xa, xb], axis=1)
        logdet = logdet + jnp.sum(scale, axis=1)
    h = jnp.take(h, params["perm"], axis=1)
    return h[:, :, None, None], logdet


if __name__ == "__main__":
    key = jax.random.PRNGKey(0)
    B, C, HIDDEN, DEPTH = 2, 4, 32, 2  # batch, in_channels, hidden_dim, hidden_depth

    k_param, k_x = jax.random.split(key)
    params = init_params(k_param, in_channels=C, hidden_dim=HIDDEN, hidden_depth=DEPTH)
    x = jax.random.normal(k_x, (B, C, 1, 1), jnp.float32)

    y, logdet = flow_block_forward(x, params)
    y = jax.block_until_ready(y)
    logdet = jax.block_until_ready(logdet)

    assert y.shape == (B, C, 1, 1)
    assert logdet.shape == (B,)

    y_ref, ld_ref = reference_forward(x, params)
    assert bool(jnp.allclose(y, y_ref, atol=5e-2, rtol=5e-2)), (
        "output mismatch, max abs err = %s" % float(jnp.max(jnp.abs(y - y_ref))))
    assert bool(jnp.allclose(logdet, ld_ref, atol=5e-2, rtol=5e-2)), (
        "logdet mismatch, max abs err = %s" % float(jnp.max(jnp.abs(logdet - ld_ref))))

    print("KERNEL_OK")
</pallas_src>

<mosaic_0001>
module attributes {stable_mosaic.version = 11 : i64} {
  func.func @kernel(%arg0: i32, %arg1: memref<16x128xf32, #tpu.memory_space<vmem>>, %arg2: memref<16x128xf32, #tpu.memory_space<vmem>>, %arg3: memref<1x128xf32, #tpu.memory_space<vmem>>, %arg4: memref<1x128xf32, #tpu.memory_space<vmem>>, %arg5: memref<1x128xf32, #tpu.memory_space<vmem>>, %arg6: memref<1x128xf32, #tpu.memory_space<vmem>>, %arg7: memref<128x256xbf16, #tpu.memory_space<vmem>>, %arg8: memref<1x256xf32, #tpu.memory_space<vmem>>, %arg9: memref<256x256xbf16, #tpu.memory_space<vmem>>, %arg10: memref<1x256xf32, #tpu.memory_space<vmem>>, %arg11: memref<256x256xbf16, #tpu.memory_space<vmem>>, %arg12: memref<1x256xf32, #tpu.memory_space<vmem>>, %arg13: memref<256x256xbf16, #tpu.memory_space<vmem>>, %arg14: memref<1x256xf32, #tpu.memory_space<vmem>>, %arg15: memref<128x256xbf16, #tpu.memory_space<vmem>>, %arg16: memref<1x256xf32, #tpu.memory_space<vmem>>, %arg17: memref<256x256xbf16, #tpu.memory_space<vmem>>, %arg18: memref<1x256xf32, #tpu.memory_space<vmem>>, %arg19: memref<256x256xbf16, #tpu.memory_space<vmem>>, %arg20: memref<1x256xf32, #tpu.memory_space<vmem>>, %arg21: memref<256x256xbf16, #tpu.memory_space<vmem>>, %arg22: memref<1x256xf32, #tpu.memory_space<vmem>>, %arg23: memref<256x128xf32, #tpu.memory_space<vmem>>, %arg24: memref<16x128xf32, #tpu.memory_space<vmem>>, %arg25: memref<16x128xf32, #tpu.memory_space<vmem>>) attributes {dimension_semantics = [#tpu.dimension_semantics<parallel>], iteration_bounds = array<i64: 1>, scalar_prefetch = 0 : i64, scratch_operands = 0 : i64, tpu.core_type = #tpu.core_type<tc>, window_params = [{transform_indices = @transform_0, window_bounds = array<i64: 16, 128>}, {transform_indices = @transform_1, window_bounds = array<i64: 16, 128>}, {pipeline_mode = #tpu.pipeline_mode<synchronous>, transform_indices = @transform_2, window_bounds = array<i64: 1, 128>}, {pipeline_mode = #tpu.pipeline_mode<synchronous>, transform_indices = @transform_3, window_bounds = array<i64: 1, 128>}, {pipeline_mode = #tpu.pipeline_mode<synchronous>, transform_indices = @transform_4, window_bounds = array<i64: 1, 128>}, {pipeline_mode = #tpu.pipeline_mode<synchronous>, transform_indices = @transform_5, window_bounds = array<i64: 1, 128>}, {pipeline_mode = #tpu.pipeline_mode<synchronous>, transform_indices = @transform_6, window_bounds = array<i64: 128, 256>}, {pipeline_mode = #tpu.pipeline_mode<synchronous>, transform_indices = @transform_7, window_bounds = array<i64: 1, 256>}, {pipeline_mode = #tpu.pipeline_mode<synchronous>, transform_indices = @transform_8, window_bounds = array<i64: 256, 256>}, {pipeline_mode = #tpu.pipeline_mode<synchronous>, transform_indices = @transform_9, window_bounds = array<i64: 1, 256>}, {pipeline_mode = #tpu.pipeline_mode<synchronous>, transform_indices = @transform_10, window_bounds = array<i64: 256, 256>}, {pipeline_mode = #tpu.pipeline_mode<synchronous>, transform_indices = @transform_11, window_bounds = array<i64: 1, 256>}, {pipeline_mode = #tpu.pipeline_mode<synchronous>, transform_indices = @transform_12, window_bounds = array<i64: 256, 256>}, {pipeline_mode = #tpu.pipeline_mode<synchronous>, transform_indices = @transform_13, window_bounds = array<i64: 1, 256>}, {pipeline_mode = #tpu.pipeline_mode<synchronous>, transform_indices = @transform_14, window_bounds = array<i64: 128, 256>}, {pipeline_mode = #tpu.pipeline_mode<synchronous>, transform_indices = @transform_15, window_bounds = array<i64: 1, 256>}, {pipeline_mode = #tpu.pipeline_mode<synchronous>, transform_indices = @transform_16, window_bounds = array<i64: 256, 256>}, {pipeline_mode = #tpu.pipeline_mode<synchronous>, transform_indices = @transform_17, window_bounds = array<i64: 1, 256>}, {pipeline_mode = #tpu.pipeline_mode<synchronous>, transform_indices = @transform_18, window_bounds = array<i64: 256, 256>}, {pipeline_mode = #tpu.pipeline_mode<synchronous>, transform_indices = @transform_19, window_bounds = array<i64: 1, 256>}, {pipeline_mode = #tpu.pipeline_mode<synchronous>, transform_indices = @transform_20, window_bounds = array<i64: 256, 256>}, {pipeline_mode = #tpu.pipeline_mode<synchronous>, transform_indices = @transform_21, window_bounds = array<i64: 1, 256>}, {pipeline_mode = #tpu.pipeline_mode<synchronous>, transform_indices = @transform_22, window_bounds = array<i64: 256, 128>}, {transform_indices = @transform_23, window_bounds = array<i64: 16, 128>}, {transform_indices = @transform_24, window_bounds = array<i64: 16, 128>}]} {
    %c0 = arith.constant 0 : index
    %c0_0 = arith.constant 0 : index
    %0 = vector.load %arg1[%c0, %c0_0] : memref<16x128xf32, #tpu.memory_space<vmem>>, vector<16x128xf32>
    %c0_1 = arith.constant 0 : index
    %c0_2 = arith.constant 0 : index
    %1 = vector.load %arg2[%c0_1, %c0_2] : memref<16x128xf32, #tpu.memory_space<vmem>>, vector<16x128xf32>
    %c0_3 = arith.constant 0 : index
    %c0_4 = arith.constant 0 : index
    %2 = vector.load %arg3[%c0_3, %c0_4] : memref<1x128xf32, #tpu.memory_space<vmem>>, vector<1x128xf32>
    %c0_5 = arith.constant 0 : index
    %c0_6 = arith.constant 0 : index
    %3 = vector.load %arg4[%c0_5, %c0_6] : memref<1x128xf32, #tpu.memory_space<vmem>>, vector<1x128xf32>
    %4 = vector.broadcast %3 : vector<1x128xf32> to vector<16x128xf32>
    %5 = arith.addf %0, %4 : vector<16x128xf32>
    %6 = vector.broadcast %2 : vector<1x128xf32> to vector<16x128xf32>
    %7 = arith.mulf %6, %5 : vector<16x128xf32>
    %c0_7 = arith.constant 0 : index
    %c0_8 = arith.constant 0 : index
    %8 = vector.load %arg5[%c0_7, %c0_8] : memref<1x128xf32, #tpu.memory_space<vmem>>, vector<1x128xf32>
    %c0_9 = arith.constant 0 : index
    %c0_10 = arith.constant 0 : index
    %9 = vector.load %arg6[%c0_9, %c0_10] : memref<1x128xf32, #tpu.memory_space<vmem>>, vector<1x128xf32>
    %10 = vector.broadcast %9 : vector<1x128xf32> to vector<16x128xf32>
    %11 = arith.addf %1, %10 : vector<16x128xf32>
    %12 = vector.broadcast %8 : vector<1x128xf32> to vector<16x128xf32>
    %13 = arith.mulf %12, %11 : vector<16x128xf32>
    %14 = arith.truncf %7 : vector<16x128xf32> to vector<16x128xbf16>
    %c0_11 = arith.constant 0 : index
    %c0_12 = arith.constant 0 : index
    %15 = vector.load %arg7[%c0_11, %c0_12] : memref<128x256xbf16, #tpu.memory_space<vmem>>, vector<128x256xbf16>
    %cst = arith.constant dense<0.000000e+00> : vector<16x256xf32>
    %16 = tpu.matmul %14, %15, %cst {dimension_numbers = #tpu.dot_dimension_numbers<[1], [0], [0], [1], [0, 0, 1, 1], [], []>} : vector<16x128xbf16>, vector<128x256xbf16>, vector<16x256xf32> -> vector<16x256xf32>
    %c0_13 = arith.constant 0 : index
    %c0_14 = arith.constant 0 : index
    %17 = vector.load %arg8[%c0_13, %c0_14] : memref<1x256xf32, #tpu.memory_space<vmem>>, vector<1x256xf32>
    %18 = vector.broadcast %17 : vector<1x256xf32> to vector<16x256xf32>
    %19 = arith.addf %16, %18 : vector<16x256xf32>
    %cst_15 = arith.constant 0.000000e+00 : f32
    %20 = vector.broadcast %cst_15 : f32 to vector<16x256xf32>
    %21 = arith.cmpf ogt, %19, %20 : vector<16x256xf32>
    %cst_16 = arith.constant 0.00999999977 : f32
    %22 = vector.broadcast %cst_16 : f32 to vector<16x256xf32>
    %23 = arith.mulf %22, %19 : vector<16x256xf32>
    %24 = arith.select %21, %19, %23 : vector<16x256xi1>, vector<16x256xf32>
    %25 = arith.truncf %24 : vector<16x256xf32> to vector<16x256xbf16>
    %c0_17 = arith.constant 0 : index
    %c0_18 = arith.constant 0 : index
    %26 = vector.load %arg9[%c0_17, %c0_18] : memref<256x256xbf16, #tpu.memory_space<vmem>>, vector<256x256xbf16>
    %cst_19 = arith.constant dense<0.000000e+00> : vector<16x256xf32>
    %27 = tpu.matmul %25, %26, %cst_19 {dimension_numbers = #tpu.dot_dimension_numbers<[1], [0], [0], [1], [0, 0, 1, 1], [], []>} : vector<16x256xbf16>, vector<256x256xbf16>, vector<16x256xf32> -> vector<16x256xf32>
    %c0_20 = arith.constant 0 : index
    %c0_21 = arith.constant 0 : index
    %28 = vector.load %arg10[%c0_20, %c0_21] : memref<1x256xf32, #tpu.memory_space<vmem>>, vector<1x256xf32>
    %29 = vector.broadcast %28 : vector<1x256xf32> to vector<16x256xf32>
    %30 = arith.addf %27, %29 : vector<16x256xf32>
    %cst_22 = arith.constant 0.000000e+00 : f32
    %31 = vector.broadcast %cst_22 : f32 to vector<16x256xf32>
    %32 = arith.cmpf ogt, %30, %31 : vector<16x256xf32>
    %cst_23 = arith.constant 0.00999999977 : f32
    %33 = vector.broadcast %cst_23 : f32 to vector<16x256xf32>
    %34 = arith.mulf %33, %30 : vector<16x256xf32>
    %35 = arith.select %32, %30, %34 : vector<16x256xi1>, vector<16x256xf32>
    %36 = arith.truncf %35 : vector<16x256xf32> to vector<16x256xbf16>
    %c0_24 = arith.constant 0 : index
    %c0_25 = arith.constant 0 : index
    %37 = vector.load %arg11[%c0_24, %c0_25] : memref<256x256xbf16, #tpu.memory_space<vmem>>, vector<256x256xbf16>
    %cst_26 = arith.constant dense<0.000000e+00> : vector<16x256xf32>
    %38 = tpu.matmul %36, %37, %cst_26 {dimension_numbers = #tpu.dot_dimension_numbers<[1], [0], [0], [1], [0, 0, 1, 1], [], []>} : vector<16x256xbf16>, vector<256x256xbf16>, vector<16x256xf32> -> vector<16x256xf32>
    %c0_27 = arith.constant 0 : index
    %c0_28 = arith.constant 0 : index
    %39 = vector.load %arg12[%c0_27, %c0_28] : memref<1x256xf32, #tpu.memory_space<vmem>>, vector<1x256xf32>
    %40 = vector.broadcast %39 : vector<1x256xf32> to vector<16x256xf32>
    %41 = arith.addf %38, %40 : vector<16x256xf32>
    %cst_29 = arith.constant 0.000000e+00 : f32
    %42 = vector.broadcast %cst_29 : f32 to vector<16x256xf32>
    %43 = arith.cmpf ogt, %41, %42 : vector<16x256xf32>
    %cst_30 = arith.constant 0.00999999977 : f32
    %44 = vector.broadcast %cst_30 : f32 to vector<16x256xf32>
    %45 = arith.mulf %44, %41 : vector<16x256xf32>
    %46 = arith.select %43, %41, %45 : vector<16x256xi1>, vector<16x256xf32>
    %47 = arith.truncf %46 : vector<16x256xf32> to vector<16x256xbf16>
    %c0_31 = arith.constant 0 : index
    %c0_32 = arith.constant 0 : index
    %48 = vector.load %arg13[%c0_31, %c0_32] : memref<256x256xbf16, #tpu.memory_space<vmem>>, vector<256x256xbf16>
    %cst_33 = arith.constant dense<0.000000e+00> : vector<16x256xf32>
    %49 = tpu.matmul %47, %48, %cst_33 {dimension_numbers = #tpu.dot_dimension_numbers<[1], [0], [0], [1], [0, 0, 1, 1], [], []>} : vector<16x256xbf16>, vector<256x256xbf16>, vector<16x256xf32> -> vector<16x256xf32>
    %c0_34 = arith.constant 0 : index
    %c0_35 = arith.constant 0 : index
    %50 = vector.load %arg14[%c0_34, %c0_35] : memref<1x256xf32, #tpu.memory_space<vmem>>, vector<1x256xf32>
    %51 = vector.broadcast %50 : vector<1x256xf32> to vector<16x256xf32>
    %52 = arith.addf %49, %51 : vector<16x256xf32>
    %53 = vector.extract_strided_slice %52 {offsets = [0, 0], sizes = [16, 128], strides = [1, 1]} : vector<16x256xf32> to vector<16x128xf32>
    %54 = math.tanh %53 : vector<16x128xf32>
    %55 = vector.extract_strided_slice %52 {offsets = [0, 128], sizes = [16, 128], strides = [1, 1]} : vector<16x256xf32> to vector<16x128xf32>
    %56 = math.exp %54 : vector<16x128xf32>
    %57 = arith.mulf %13, %56 : vector<16x128xf32>
    %58 = arith.addf %57, %55 : vector<16x128xf32>
    %cst_36 = arith.constant dense<0.000000e+00> : vector<16xf32>
    %59 = vector.multi_reduction <add>, %54, %cst_36 [1] : vector<16x128xf32> to vector<16xf32>
    %60 = vector.shape_cast %59 : vector<16xf32> to vector<16x1xf32>
    %61 = arith.truncf %58 : vector<16x128xf32> to vector<16x128xbf16>
    %c0_37 = arith.constant 0 : index
    %c0_38 = arith.constant 0 : index
    %62 = vector.load %arg15[%c0_37, %c0_38] : memref<128x256xbf16, #tpu.memory_space<vmem>>, vector<128x256xbf16>
    %cst_39 = arith.constant dense<0.000000e+00> : vector<16x256xf32>
    %63 = tpu.matmul %61, %62, %cst_39 {dimension_numbers = #tpu.dot_dimension_numbers<[1], [0], [0], [1], [0, 0, 1, 1], [], []>} : vector<16x128xbf16>, vector<128x256xbf16>, vector<16x256xf32> -> vector<16x256xf32>
    %c0_40 = arith.constant 0 : index
    %c0_41 = arith.constant 0 : index
    %64 = vector.load %arg16[%c0_40, %c0_41] : memref<1x256xf32, #tpu.memory_space<vmem>>, vector<1x256xf32>
    %65 = vector.broadcast %64 : vector<1x256xf32> to vector<16x256xf32>
    %66 = arith.addf %63, %65 : vector<16x256xf32>
    %cst_42 = arith.constant 0.000000e+00 : f32
    %67 = vector.broadcast %cst_42 : f32 to vector<16x256xf32>
    %68 = arith.cmpf ogt, %66, %67 : vector<16x256xf32>
    %cst_43 = arith.constant 0.00999999977 : f32
    %69 = vector.broadcast %cst_43 : f32 to vector<16x256xf32>
    %70 = arith.mulf %69, %66 : vector<16x256xf32>
    %71 = arith.select %68, %66, %70 : vector<16x256xi1>, vector<16x256xf32>
    %72 = arith.truncf %71 : vector<16x256xf32> to vector<16x256xbf16>
    %c0_44 = arith.constant 0 : index
    %c0_45 = arith.constant 0 : index
    %73 = vector.load %arg17[%c0_44, %c0_45] : memref<256x256xbf16, #tpu.memory_space<vmem>>, vector<256x256xbf16>
    %cst_46 = arith.constant dense<0.000000e+00> : vector<16x256xf32>
    %74 = tpu.matmul %72, %73, %cst_46 {dimension_numbers = #tpu.dot_dimension_numbers<[1], [0], [0], [1], [0, 0, 1, 1], [], []>} : vector<16x256xbf16>, vector<256x256xbf16>, vector<16x256xf32> -> vector<16x256xf32>
    %c0_47 = arith.constant 0 : index
    %c0_48 = arith.constant 0 : index
    %75 = vector.load %arg18[%c0_47, %c0_48] : memref<1x256xf32, #tpu.memory_space<vmem>>, vector<1x256xf32>
    %76 = vector.broadcast %75 : vector<1x256xf32> to vector<16x256xf32>
    %77 = arith.addf %74, %76 : vector<16x256xf32>
    %cst_49 = arith.constant 0.000000e+00 : f32
    %78 = vector.broadcast %cst_49 : f32 to vector<16x256xf32>
    %79 = arith.cmpf ogt, %77, %78 : vector<16x256xf32>
    %cst_50 = arith.constant 0.00999999977 : f32
    %80 = vector.broadcast %cst_50 : f32 to vector<16x256xf32>
    %81 = arith.mulf %80, %77 : vector<16x256xf32>
    %82 = arith.select %79, %77, %81 : vector<16x256xi1>, vector<16x256xf32>
    %83 = arith.truncf %82 : vector<16x256xf32> to vector<16x256xbf16>
    %c0_51 = arith.constant 0 : index
    %c0_52 = arith.constant 0 : index
    %84 = vector.load %arg19[%c0_51, %c0_52] : memref<256x256xbf16, #tpu.memory_space<vmem>>, vector<256x256xbf16>
    %cst_53 = arith.constant dense<0.000000e+00> : vector<16x256xf32>
    %85 = tpu.matmul %83, %84, %cst_53 {dimension_numbers = #tpu.dot_dimension_numbers<[1], [0], [0], [1], [0, 0, 1, 1], [], []>} : vector<16x256xbf16>, vector<256x256xbf16>, vector<16x256xf32> -> vector<16x256xf32>
    %c0_54 = arith.constant 0 : index
    %c0_55 = arith.constant 0 : index
    %86 = vector.load %arg20[%c0_54, %c0_55] : memref<1x256xf32, #tpu.memory_space<vmem>>, vector<1x256xf32>
    %87 = vector.broadcast %86 : vector<1x256xf32> to vector<16x256xf32>
    %88 = arith.addf %85, %87 : vector<16x256xf32>
    %cst_56 = arith.constant 0.000000e+00 : f32
    %89 = vector.broadcast %cst_56 : f32 to vector<16x256xf32>
    %90 = arith.cmpf ogt, %88, %89 : vector<16x256xf32>
    %cst_57 = arith.constant 0.00999999977 : f32
    %91 = vector.broadcast %cst_57 : f32 to vector<16x256xf32>
    %92 = arith.mulf %91, %88 : vector<16x256xf32>
    %93 = arith.select %90, %88, %92 : vector<16x256xi1>, vector<16x256xf32>
    %94 = arith.truncf %93 : vector<16x256xf32> to vector<16x256xbf16>
    %c0_58 = arith.constant 0 : index
    %c0_59 = arith.constant 0 : index
    %95 = vector.load %arg21[%c0_58, %c0_59] : memref<256x256xbf16, #tpu.memory_space<vmem>>, vector<256x256xbf16>
    %cst_60 = arith.constant dense<0.000000e+00> : vector<16x256xf32>
    %96 = tpu.matmul %94, %95, %cst_60 {dimension_numbers = #tpu.dot_dimension_numbers<[1], [0], [0], [1], [0, 0, 1, 1], [], []>} : vector<16x256xbf16>, vector<256x256xbf16>, vector<16x256xf32> -> vector<16x256xf32>
    %c0_61 = arith.constant 0 : index
    %c0_62 = arith.constant 0 : index
    %97 = vector.load %arg22[%c0_61, %c0_62] : memref<1x256xf32, #tpu.memory_space<vmem>>, vector<1x256xf32>
    %98 = vector.broadcast %97 : vector<1x256xf32> to vector<16x256xf32>
    %99 = arith.addf %96, %98 : vector<16x256xf32>
    %100 = vector.extract_strided_slice %99 {offsets = [0, 0], sizes = [16, 128], strides = [1, 1]} : vector<16x256xf32> to vector<16x128xf32>
    %101 = math.tanh %100 : vector<16x128xf32>
    %102 = vector.extract_strided_slice %99 {offsets = [0, 128], sizes = [16, 128], strides = [1, 1]} : vector<16x256xf32> to vector<16x128xf32>
    %103 = math.exp %101 : vector<16x128xf32>
    %104 = arith.mulf %7, %103 : vector<16x128xf32>
    %105 = arith.addf %104, %102 : vector<16x128xf32>
    %cst_63 = arith.constant dense<0.000000e+00> : vector<16xf32>
    %106 = vector.multi_reduction <add>, %101, %cst_63 [1] : vector<16x128xf32> to vector<16xf32>
    %107 = vector.shape_cast %106 : vector<16xf32> to vector<16x1xf32>
    %108 = tpu.concatenate %58, %105 in 1 : vector<16x128xf32>, vector<16x128xf32> -> vector<16x256xf32>
    %c0_64 = arith.constant 0 : index
    %c0_65 = arith.constant 0 : index
    %109 = vector.load %arg23[%c0_64, %c0_65] : memref<256x128xf32, #tpu.memory_space<vmem>>, vector<256x128xf32>
    %cst_66 = arith.constant dense<0.000000e+00> : vector<16x128xf32>
    %110 = tpu.matmul %108, %109, %cst_66 {dimension_numbers = #tpu.dot_dimension_numbers<[1], [0], [0], [1], [0, 0, 1, 1], [], []>} : vector<16x256xf32>, vector<256x128xf32>, vector<16x128xf32> -> vector<16x128xf32>
    %c0_67 = arith.constant 0 : index
    %c0_68 = arith.constant 0 : index
    %111 = vector.load %arg24[%c0_67, %c0_68] : memref<16x128xf32, #tpu.memory_space<vmem>>, vector<16x128xf32>
    tpu.vector_store %arg24[%c0_67, %c0_68], %110 {strides = array<i32>} : memref<16x128xf32, #tpu.memory_space<vmem>>, vector<16x128xf32>,
    %112 = arith.addf %60, %107 : vector<16x1xf32>
    %113 = vector.shape_cast %112 : vector<16x1xf32> to vector<16x1xf32>
    %114 = vector.broadcast %113 : vector<16x1xf32> to vector<16x128xf32>
    %c0_69 = arith.constant 0 : index
    %c0_70 = arith.constant 0 : index
    %115 = vector.load %arg25[%c0_69, %c0_70] : memref<16x128xf32, #tpu.memory_space<vmem>>, vector<16x128xf32>
    tpu.vector_store %arg25[%c0_69, %c0_70], %114 {strides = array<i32>} : memref<16x128xf32, #tpu.memory_space<vmem>>, vector<16x128xf32>,
    return
  }
  func.func @transform_0(%arg0: i32) -> (i32, i32) {
    %c0_i32 = arith.constant 0 : i32
    %c0_i32_0 = arith.constant 0 : i32
    return %arg0, %c0_i32 : i32, i32
  }
  func.func @transform_1(%arg0: i32) -> (i32, i32) {
    %c0_i32 = arith.constant 0 : i32
    %c0_i32_0 = arith.constant 0 : i32
    return %arg0, %c0_i32 : i32, i32
  }
  func.func @transform_2(%arg0: i32) -> (i32, i32) {
    %c0_i32 = arith.constant 0 : i32
    %c0_i32_0 = arith.constant 0 : i32
    %c0_i32_1 = arith.constant 0 : i32
    return %c0_i32, %c0_i32_0 : i32, i32
  }
  func.func @transform_3(%arg0: i32) -> (i32, i32) {
    %c0_i32 = arith.constant 0 : i32
    %c0_i32_0 = arith.constant 0 : i32
    %c0_i32_1 = arith.constant 0 : i32
    return %c0_i32, %c0_i32_0 : i32, i32
  }
  func.func @transform_4(%arg0: i32) -> (i32, i32) {
    %c0_i32 = arith.constant 0 : i32
    %c0_i32_0 = arith.constant 0 : i32
    %c0_i32_1 = arith.constant 0 : i32
    return %c0_i32, %c0_i32_0 : i32, i32
  }
  func.func @transform_5(%arg0: i32) -> (i32, i32) {
    %c0_i32 = arith.constant 0 : i32
    %c0_i32_0 = arith.constant 0 : i32
    %c0_i32_1 = arith.constant 0 : i32
    return %c0_i32, %c0_i32_0 : i32, i32
  }
  func.func @transform_6(%arg0: i32) -> (i32, i32) {
    %c0_i32 = arith.constant 0 : i32
    %c0_i32_0 = arith.constant 0 : i32
    %c0_i32_1 = arith.constant 0 : i32
    return %c0_i32, %c0_i32_0 : i32, i32
  }
  func.func @transform_7(%arg0: i32) -> (i32, i32) {
    %c0_i32 = arith.constant 0 : i32
    %c0_i32_0 = arith.constant 0 : i32
    %c0_i32_1 = arith.constant 0 : i32
    return %c0_i32, %c0_i32_0 : i32, i32
  }
  func.func @transform_8(%arg0: i32) -> (i32, i32) {
    %c0_i32 = arith.constant 0 : i32
    %c0_i32_0 = arith.constant 0 : i32
    %c0_i32_1 = arith.constant 0 : i32
    return %c0_i32, %c0_i32_0 : i32, i32
  }
  func.func @transform_9(%arg0: i32) -> (i32, i32) {
    %c0_i32 = arith.constant 0 : i32
    %c0_i32_0 = arith.constant 0 : i32
    %c0_i32_1 = arith.constant 0 : i32
    return %c0_i32, %c0_i32_0 : i32, i32
  }
  func.func @transform_10(%arg0: i32) -> (i32, i32) {
    %c0_i32 = arith.constant 0 : i32
    %c0_i32_0 = arith.constant 0 : i32
    %c0_i32_1 = arith.constant 0 : i32
    return %c0_i32, %c0_i32_0 : i32, i32
  }
  func.func @transform_11(%arg0: i32) -> (i32, i32) {
    %c0_i32 = arith.constant 0 : i32
    %c0_i32_0 = arith.constant 0 : i32
    %c0_i32_1 = arith.constant 0 : i32
    return %c0_i32, %c0_i32_0 : i32, i32
  }
  func.func @transform_12(%arg0: i32) -> (i32, i32) {
    %c0_i32 = arith.constant 0 : i32
    %c0_i32_0 = arith.constant 0 : i32
    %c0_i32_1 = arith.constant 0 : i32
    return %c0_i32, %c0_i32_0 : i32, i32
  }
  func.func @transform_13(%arg0: i32) -> (i32, i32) {
    %c0_i32 = arith.constant 0 : i32
    %c0_i32_0 = arith.constant 0 : i32
    %c0_i32_1 = arith.constant 0 : i32
    return %c0_i32, %c0_i32_0 : i32, i32
  }
  func.func @transform_14(%arg0: i32) -> (i32, i32) {
    %c0_i32 = arith.constant 0 : i32
    %c0_i32_0 = arith.constant 0 : i32
    %c0_i32_1 = arith.constant 0 : i32
    return %c0_i32, %c0_i32_0 : i32, i32
  }
  func.func @transform_15(%arg0: i32) -> (i32, i32) {
    %c0_i32 = arith.constant 0 : i32
    %c0_i32_0 = arith.constant 0 : i32
    %c0_i32_1 = arith.constant 0 : i32
    return %c0_i32, %c0_i32_0 : i32, i32
  }
  func.func @transform_16(%arg0: i32) -> (i32, i32) {
    %c0_i32 = arith.constant 0 : i32
    %c0_i32_0 = arith.constant 0 : i32
    %c0_i32_1 = arith.constant 0 : i32
    return %c0_i32, %c0_i32_0 : i32, i32
  }
  func.func @transform_17(%arg0: i32) -> (i32, i32) {
    %c0_i32 = arith.constant 0 : i32
    %c0_i32_0 = arith.constant 0 : i32
    %c0_i32_1 = arith.constant 0 : i32
    return %c0_i32, %c0_i32_0 : i32, i32
  }
  func.func @transform_18(%arg0: i32) -> (i32, i32) {
    %c0_i32 = arith.constant 0 : i32
    %c0_i32_0 = arith.constant 0 : i32
    %c0_i32_1 = arith.constant 0 : i32
    return %c0_i32, %c0_i32_0 : i32, i32
  }
  func.func @transform_19(%arg0: i32) -> (i32, i32) {
    %c0_i32 = arith.constant 0 : i32
    %c0_i32_0 = arith.constant 0 : i32
    %c0_i32_1 = arith.constant 0 : i32
    return %c0_i32, %c0_i32_0 : i32, i32
  }
  func.func @transform_20(%arg0: i32) -> (i32, i32) {
    %c0_i32 = arith.constant 0 : i32
    %c0_i32_0 = arith.constant 0 : i32
    %c0_i32_1 = arith.constant 0 : i32
    return %c0_i32, %c0_i32_0 : i32, i32
  }
  func.func @transform_21(%arg0: i32) -> (i32, i32) {
    %c0_i32 = arith.constant 0 : i32
    %c0_i32_0 = arith.constant 0 : i32
    %c0_i32_1 = arith.constant 0 : i32
    return %c0_i32, %c0_i32_0 : i32, i32
  }
  func.func @transform_22(%arg0: i32) -> (i32, i32) {
    %c0_i32 = arith.constant 0 : i32
    %c0_i32_0 = arith.constant 0 : i32
    %c0_i32_1 = arith.constant 0 : i32
    return %c0_i32, %c0_i32_0 : i32, i32
  }
  func.func @transform_23(%arg0: i32) -> (i32, i32) {
    %c0_i32 = arith.constant 0 : i32
    %c0_i32_0 = arith.constant 0 : i32
    return %arg0, %c0_i32 : i32, i32
  }
  func.func @transform_24(%arg0: i32) -> (i32, i32) {
    %c0_i32 = arith.constant 0 : i32
    %c0_i32_0 = arith.constant 0 : i32
    return %arg0, %c0_i32 : i32, i32
  }
}

</mosaic_0001>

<llo_original>
// kernel: _flow_block_forward.1
$region0: #{_flow_block_forward.1}
  #allocation0 [shape = 'u32[]', space=smem, size = 0x4, offset = 0x4, fixed_abs, tag = 'smem constant byte address 0x4 - core index']
  #allocation1 [shape = 'u32[144,128]{1,0:T(1,128)}', space=vmem, size = 0x12000, scoped, tag = 'internal scratch']
  %s0 = inlined_call_operand.vmem [shape: f32[16,128], index: 0, kind: input, shape index: {}]
  %s1 = inlined_call_operand.vmem [shape: f32[16,128], index: 1, kind: input, shape index: {}]
  %s2 = inlined_call_operand.vmem [shape: f32[1,128], index: 2, kind: input, shape index: {}]
  %s3 = inlined_call_operand.vmem [shape: f32[1,128], index: 3, kind: input, shape index: {}]
  %s4 = inlined_call_operand.vmem [shape: f32[1,128], index: 4, kind: input, shape index: {}]
  %s5 = inlined_call_operand.vmem [shape: f32[1,128], index: 5, kind: input, shape index: {}]
  %s6 = inlined_call_operand.vmem [shape: bf16[128,256], index: 6, kind: input, shape index: {}]
  %s7 = inlined_call_operand.vmem [shape: f32[1,256], index: 7, kind: input, shape index: {}]
  %s8 = inlined_call_operand.vmem [shape: bf16[256,256], index: 8, kind: input, shape index: {}]
  %s9 = inlined_call_operand.vmem [shape: f32[1,256], index: 9, kind: input, shape index: {}]
  %s10 = inlined_call_operand.vmem [shape: bf16[256,256], index: 10, kind: input, shape index: {}]
  %s11 = inlined_call_operand.vmem [shape: f32[1,256], index: 11, kind: input, shape index: {}]
  %s12 = inlined_call_operand.vmem [shape: bf16[256,256], index: 12, kind: input, shape index: {}]
  %s13 = inlined_call_operand.vmem [shape: f32[1,256], index: 13, kind: input, shape index: {}]
  %s14 = inlined_call_operand.vmem [shape: bf16[128,256], index: 14, kind: input, shape index: {}]
  %s15 = inlined_call_operand.vmem [shape: f32[1,256], index: 15, kind: input, shape index: {}]
  %s16 = inlined_call_operand.vmem [shape: bf16[256,256], index: 16, kind: input, shape index: {}]
  %s17 = inlined_call_operand.vmem [shape: f32[1,256], index: 17, kind: input, shape index: {}]
  %s18 = inlined_call_operand.vmem [shape: bf16[256,256], index: 18, kind: input, shape index: {}]
  %s19 = inlined_call_operand.vmem [shape: f32[1,256], index: 19, kind: input, shape index: {}]
  %s20 = inlined_call_operand.vmem [shape: bf16[256,256], index: 20, kind: input, shape index: {}]
  %s21 = inlined_call_operand.vmem [shape: f32[1,256], index: 21, kind: input, shape index: {}]
  %s22 = inlined_call_operand.vmem [shape: f32[256,128], index: 22, kind: input, shape index: {}]
  %s23 = inlined_call_operand.vmem [shape: f32[16,128], index: 23, kind: output, shape index: {0}]
  %s24 = inlined_call_operand.vmem [shape: f32[16,128], index: 24, kind: output, shape index: {1}]
  %25 = xla_tuple %s23, %s24
  %s26 = sld [smem:[#allocation0]]
  $region110: #{_flow_block_forward.1} parent=0
    _
  %s28 = ssub.s32 1, %s26
  %s29 = scalar_select 0, %s28, %s26
  // Predicated region
  $region2: #{_flow_block_forward.1} parent=0 // pred_check
    _
  $region3: #{_flow_block_forward.1} parent=0 // pred_check_branch
    %31 = sbr.rel (0) target = $region5
  $region4: #{_flow_block_forward.1} parent=0 // pred_region
    _
  $region5: #{_flow_block_forward.1} parent=0 // pred_fallthru
    _
  // Predicated region
  $region6: #{_flow_block_forward.1} parent=0 // pred_check
    _
  $region7: #{_flow_block_forward.1} parent=0 // pred_check_branch
    %33 = sbr.rel (0) target = $region9
  $region8: #{_flow_block_forward.1} parent=0 // pred_region
    _
  $region9: #{_flow_block_forward.1} parent=0 // pred_fallthru
    _
  // Predicated region
  $region10: #{_flow_block_forward.1} parent=0 // pred_check
    _
  $region11: #{_flow_block_forward.1} parent=0 // pred_check_branch
    %35 = sbr.rel (0) target = $region13
  $region12: #{_flow_block_forward.1} parent=0 // pred_region
    _
  $region13: #{_flow_block_forward.1} parent=0 // pred_fallthru
    _
  // Predicated region
  $region14: #{_flow_block_forward.1} parent=0 // pred_check
    _
  $region15: #{_flow_block_forward.1} parent=0 // pred_check_branch
    %37 = sbr.rel (0) target = $region17
  $region16: #{_flow_block_forward.1} parent=0 // pred_region
    _
  $region17: #{_flow_block_forward.1} parent=0 // pred_fallthru
    _
  // Predicated region
  $region18: #{_flow_block_forward.1} parent=0 // pred_check
    _
  $region19: #{_flow_block_forward.1} parent=0 // pred_check_branch
    %39 = sbr.rel (0) target = $region21
  $region20: #{_flow_block_forward.1} parent=0 // pred_region
    _
  $region21: #{_flow_block_forward.1} parent=0 // pred_fallthru
    _
  // Predicated region
  $region22: #{_flow_block_forward.1} parent=0 // pred_check
    _
  $region23: #{_flow_block_forward.1} parent=0 // pred_check_branch
    %41 = sbr.rel (0) target = $region25
  $region24: #{_flow_block_forward.1} parent=0 // pred_region
    _
  $region25: #{_flow_block_forward.1} parent=0 // pred_fallthru
    _
  // Predicated region
  $region26: #{_flow_block_forward.1} parent=0 // pred_check
    _
  $region27: #{_flow_block_forward.1} parent=0 // pred_check_branch
    %43 = sbr.rel (0) target = $region29
  $region28: #{_flow_block_forward.1} parent=0 // pred_region
    _
  $region29: #{_flow_block_forward.1} parent=0 // pred_fallthru
    _
  // Predicated region
  $region30: #{_flow_block_forward.1} parent=0 // pred_check
    _
  $region31: #{_flow_block_forward.1} parent=0 // pred_check_branch
    %45 = sbr.rel (0) target = $region33
  $region32: #{_flow_block_forward.1} parent=0 // pred_region
    _
  $region33: #{_flow_block_forward.1} parent=0 // pred_fallthru
    _
  // Predicated region
  $region34: #{_flow_block_forward.1} parent=0 // pred_check
    _
  $region35: #{_flow_block_forward.1} parent=0 // pred_check_branch
    %47 = sbr.rel (0) target = $region37
  $region36: #{_flow_block_forward.1} parent=0 // pred_region
    _
  $region37: #{_flow_block_forward.1} parent=0 // pred_fallthru
    _
  // Predicated region
  $region38: #{_flow_block_forward.1} parent=0 // pred_check
    _
  $region39: #{_flow_block_forward.1} parent=0 // pred_check_branch
    %49 = sbr.rel (0) target = $region41
  $region40: #{_flow_block_forward.1} parent=0 // pred_region
    _
  $region41: #{_flow_block_forward.1} parent=0 // pred_fallthru
    _
  // Predicated region
  $region42: #{_flow_block_forward.1} parent=0 // pred_check
    _
  $region43: #{_flow_block_forward.1} parent=0 // pred_check_branch
    %51 = sbr.rel (0) target = $region45
  $region44: #{_flow_block_forward.1} parent=0 // pred_region
    _
  $region45: #{_flow_block_forward.1} parent=0 // pred_fallthru
    _
  // Predicated region
  $region46: #{_flow_block_forward.1} parent=0 // pred_check
    _
  $region47: #{_flow_block_forward.1} parent=0 // pred_check_branch
    %53 = sbr.rel (0) target = $region49
  $region48: #{_flow_block_forward.1} parent=0 // pred_region
    _
  $region49: #{_flow_block_forward.1} parent=0 // pred_fallthru
    _
  // Predicated region
  $region50: #{_flow_block_forward.1} parent=0 // pred_check
    _
  $region51: #{_flow_block_forward.1} parent=0 // pred_check_branch
    %55 = sbr.rel (0) target = $region53
  $region52: #{_flow_block_forward.1} parent=0 // pred_region
    _
  $region53: #{_flow_block_forward.1} parent=0 // pred_fallthru
    _
  // Predicated region
  $region54: #{_flow_block_forward.1} parent=0 // pred_check
    _
  $region55: #{_flow_block_forward.1} parent=0 // pred_check_branch
    %57 = sbr.rel (0) target = $region57
  $region56: #{_flow_block_forward.1} parent=0 // pred_region
    _
  $region57: #{_flow_block_forward.1} parent=0 // pred_fallthru
    _
  // Predicated region
  $region58: #{_flow_block_forward.1} parent=0 // pred_check
    _
  $region59: #{_flow_block_forward.1} parent=0 // pred_check_branch
    %59 = sbr.rel (0) target = $region61
  $region60: #{_flow_block_forward.1} parent=0 // pred_region
    _
  $region61: #{_flow_block_forward.1} parent=0 // pred_fallthru
    _
  // Predicated region
  $region62: #{_flow_block_forward.1} parent=0 // pred_check
    _
  $region63: #{_flow_block_forward.1} parent=0 // pred_check_branch
    %61 = sbr.rel (0) target = $region65
  $region64: #{_flow_block_forward.1} parent=0 // pred_region
    _
  $region65: #{_flow_block_forward.1} parent=0 // pred_fallthru
    _
  // Predicated region
  $region66: #{_flow_block_forward.1} parent=0 // pred_check
    _
  $region67: #{_flow_block_forward.1} parent=0 // pred_check_branch
    %63 = sbr.rel (0) target = $region69
  $region68: #{_flow_block_forward.1} parent=0 // pred_region
    _
  $region69: #{_flow_block_forward.1} parent=0 // pred_fallthru
    _
  // Predicated region
  $region70: #{_flow_block_forward.1} parent=0 // pred_check
    _
  $region71: #{_flow_block_forward.1} parent=0 // pred_check_branch
    %65 = sbr.rel (0) target = $region73
  $region72: #{_flow_block_forward.1} parent=0 // pred_region
    _
  $region73: #{_flow_block_forward.1} parent=0 // pred_fallthru
    _
  // Predicated region
  $region74: #{_flow_block_forward.1} parent=0 // pred_check
    _
  $region75: #{_flow_block_forward.1} parent=0 // pred_check_branch
    %67 = sbr.rel (0) target = $region77
  $region76: #{_flow_block_forward.1} parent=0 // pred_region
    _
  $region77: #{_flow_block_forward.1} parent=0 // pred_fallthru
    _
  // Predicated region
  $region78: #{_flow_block_forward.1} parent=0 // pred_check
    _
  $region79: #{_flow_block_forward.1} parent=0 // pred_check_branch
    %69 = sbr.rel (0) target = $region81
  $region80: #{_flow_block_forward.1} parent=0 // pred_region
    _
  $region81: #{_flow_block_forward.1} parent=0 // pred_fallthru
    _
  // Predicated region
  $region82: #{_flow_block_forward.1} parent=0 // pred_check
    _
  $region83: #{_flow_block_forward.1} parent=0 // pred_check_branch
    %71 = sbr.rel (0) target = $region85
  $region84: #{_flow_block_forward.1} parent=0 // pred_region
    _
  $region85: #{_flow_block_forward.1} parent=0 // pred_fallthru
    _
  // Predicated region
  $region86: #{_flow_block_forward.1} parent=0 // pred_check
    _
  $region87: #{_flow_block_forward.1} parent=0 // pred_check_branch
    %73 = sbr.rel (0) target = $region89
  $region88: #{_flow_block_forward.1} parent=0 // pred_region
    _
  $region89: #{_flow_block_forward.1} parent=0 // pred_fallthru
    _
  // Predicated region
  $region90: #{_flow_block_forward.1} parent=0 // pred_check
    _
  $region91: #{_flow_block_forward.1} parent=0 // pred_check_branch
    %75 = sbr.rel (0) target = $region93
  $region92: #{_flow_block_forward.1} parent=0 // pred_region
    _
  $region93: #{_flow_block_forward.1} parent=0 // pred_fallthru
    _
  %v77 = vld [vmem:[%s0] sm:$0xff]
  %v78 = vld [vmem:[%s0 + $0x8] sm:$0xff]
  %v79 = vld [vmem:[%s1] sm:$0xff]
  %v80 = vld [vmem:[%s1 + $0x8] sm:$0xff]
  %v81 = vld [vmem:[%s2] sm:$0x1]
  %v82 = vld [vmem:[%s3] sm:$0x1]
  %v84 = vlaneseq
  %v85 = vshrl.u32 %v84, 7
  %v86 = vsub.s32 0, %v85
  %v87 = vrot.slane %v82, %v86
  %v89 = vadd.f32 %v77, %v87
  %v90 = vadd.f32 %v78, %v87
  %v92 = vlaneseq
  %v93 = vshrl.u32 %v92, 7
  %v94 = vsub.s32 0, %v93
  %v95 = vrot.slane %v81, %v94
  %v97 = vmul.f32 %v95, %v89
  %v98 = vmul.f32 %v95, %v90
  %v99 = vld [vmem:[%s4] sm:$0x1]
  %v100 = vld [vmem:[%s5] sm:$0x1]
  %v102 = vlaneseq
  %v103 = vshrl.u32 %v102, 7
  %v104 = vsub.s32 0, %v103
  %v105 = vrot.slane %v100, %v104
  %v107 = vadd.f32 %v79, %v105
  %v108 = vadd.f32 %v80, %v105
  %v110 = vlaneseq
  %v111 = vshrl.u32 %v110, 7
  %v112 = vsub.s32 0, %v111
  %v113 = vrot.slane %v99, %v112
  %v115 = vmul.f32 %v113, %v107
  %v116 = vmul.f32 %v113, %v108
  %v117 = vpack.c.bf16 %v98, %v97
  %v118 = vld [vmem:[%s6] sm:$0xff]
  %v119 = vld [vmem:[%s6 + $0x8] sm:$0xff]
  %v120 = vld [vmem:[%s6 + $0x10] sm:$0xff]
  %v121 = vld [vmem:[%s6 + $0x18] sm:$0xff]
  %v122 = vld [vmem:[%s6 + $0x20] sm:$0xff]
  %v123 = vld [vmem:[%s6 + $0x28] sm:$0xff]
  %v124 = vld [vmem:[%s6 + $0x30] sm:$0xff]
  %v125 = vld [vmem:[%s6 + $0x38] sm:$0xff]
  %v126 = vld [vmem:[%s6 + $0x40] sm:$0xff]
  %v127 = vld [vmem:[%s6 + $0x48] sm:$0xff]
  %v128 = vld [vmem:[%s6 + $0x50] sm:$0xff]
  %v129 = vld [vmem:[%s6 + $0x58] sm:$0xff]
  %v130 = vld [vmem:[%s6 + $0x60] sm:$0xff]
  %v131 = vld [vmem:[%s6 + $0x68] sm:$0xff]
  %v132 = vld [vmem:[%s6 + $0x70] sm:$0xff]
  %v133 = vld [vmem:[%s6 + $0x78] sm:$0xff]
  %v134 = vld [vmem:[%s7] sm:$0x3]
  %v136 = vlaneseq
  %v137 = vshrl.u32 %v136, 7
  %v138 = vsub.s32 0, %v137
  %v139 = vrot.slane %v134, %v138
  %v140 = vlaneseq
  %v141 = vshrl.u32 %v140, 7
  %v142 = vsub.s32 1, %v141
  %v143 = vrot.slane %v134, %v142
  %v162 = vunpack.c.l.b16 %v118
  %v163 = vunpack.c.h.b16 %v118
  %v164 = vunpack.c.l.b16 %v119
  %v165 = vunpack.c.h.b16 %v119
  %v166 = vunpack.c.l.b16 %v120
  %v167 = vunpack.c.h.b16 %v120
  %v168 = vunpack.c.l.b16 %v121
  %v169 = vunpack.c.h.b16 %v121
  %v170 = vunpack.c.l.b16 %v122
  %v171 = vunpack.c.h.b16 %v122
  %v172 = vunpack.c.l.b16 %v123
  %v173 = vunpack.c.h.b16 %v123
  %v174 = vunpack.c.l.b16 %v124
  %v175 = vunpack.c.h.b16 %v124
  %v176 = vunpack.c.l.b16 %v125
  %v177 = vunpack.c.h.b16 %v125
  %v178 = vunpack.c.l.b16 %v126
  %v179 = vunpack.c.h.b16 %v126
  %v180 = vunpack.c.l.b16 %v127
  %v181 = vunpack.c.h.b16 %v127
  %v182 = vunpack.c.l.b16 %v128
  %v183 = vunpack.c.h.b16 %v128
  %v184 = vunpack.c.l.b16 %v129
  %v185 = vunpack.c.h.b16 %v129
  %v186 = vunpack.c.l.b16 %v130
  %v187 = vunpack.c.h.b16 %v130
  %v188 = vunpack.c.l.b16 %v131
  %v189 = vunpack.c.h.b16 %v131
  %v190 = vunpack.c.l.b16 %v132
  %v191 = vunpack.c.h.b16 %v132
  %v192 = vunpack.c.l.b16 %v133
  %v193 = vunpack.c.h.b16 %v133
  %v194 = vpack.c.b16 %v164, %v162
  %v195 = vpack.c.b16 %v165, %v163
  %v196 = vpack.c.b16 %v168, %v166
  %v197 = vpack.c.b16 %v169, %v167
  %v198 = vpack.c.b16 %v172, %v170
  %v199 = vpack.c.b16 %v173, %v171
  %v200 = vpack.c.b16 %v176, %v174
  %v201 = vpack.c.b16 %v177, %v175
  %v202 = vpack.c.b16 %v180, %v178
  %v203 = vpack.c.b16 %v181, %v179
  %v204 = vpack.c.b16 %v184, %v182
  %v205 = vpack.c.b16 %v185, %v183
  %v206 = vpack.c.b16 %v188, %v186
  %v207 = vpack.c.b16 %v189, %v187
  %v208 = vpack.c.b16 %v192, %v190
  %v209 = vpack.c.b16 %v193, %v191
  %226 = vmatprep.subr.bf16.mxu0 %v209
  %227 = vmatpush1.bf16.msra.mxu0 %v208
  %228 = vmatprep.subr.bf16.mxu0 %v207
  %229 = vmatpush1.bf16.msra.mxu0 %v206
  %230 = vmatprep.subr.bf16.mxu0 %v205
  %231 = vmatpush1.bf16.msra.mxu0 %v204
  %232 = vmatprep.subr.bf16.mxu0 %v203
  %233 = vmatpush1.bf16.msra.mxu0 %v202
  %234 = vmatprep.subr.bf16.mxu0 %v201
  %235 = vmatpush1.bf16.msra.mxu0 %v200
  %236 = vmatprep.subr.bf16.mxu0 %v199
  %237 = vmatpush1.bf16.msra.mxu0 %v198
  %238 = vmatprep.subr.bf16.mxu0 %v197
  %239 = vmatpush1.bf16.msra.mxu0 %v196
  %240 = vmatprep.subr.bf16.mxu0 %v195
  %241 = vmatpush1.bf16.msra.mxu0 %v194
  %242 = vmatprep.subr.bf16.mxu0 0
  %243 = vmatpush2.bf16.msra.mxu0 0
  %244 = vmatprep.subr.bf16.mxu0 0
  %245 = vmatpush2.bf16.msra.mxu0 0
  %246 = vmatprep.subr.bf16.mxu0 0
  %247 = vmatpush2.bf16.msra.mxu0 0
  %248 = vmatprep.subr.bf16.mxu0 0
  %249 = vmatpush2.bf16.msra.mxu0 0
  %250 = vmatprep.subr.bf16.mxu0 0
  %251 = vmatpush2.bf16.msra.mxu0 0
  %252 = vmatprep.subr.bf16.mxu0 0
  %253 = vmatpush2.bf16.msra.mxu0 0
  %254 = vmatprep.subr.bf16.mxu0 0
  %255 = vmatpush2.bf16.msra.mxu0 0
  %256 = vmatprep.subr.bf16.mxu0 0
  %257 = vmatpush2.bf16.msra.mxu0 0
  %258 = vmatprep.mubr.bf16.mxu0 0
  %259 = vmatmul.mubr.bf16.gmra.mxu0 %v117
  %v260 = vpop.f32.mrf.mxu0
  %v261 = vadd.f32 %v139, %v260
  %v262 = vpop.f32.mrf.mxu0
  %v263 = vadd.f32 %v143, %v262
  %v264 = vpop.f32.mrf.mxu0
  %v265 = vadd.f32 %v139, %v264
  %v266 = vpop.f32.mrf.mxu0
  %v267 = vadd.f32 %v143, %v266
  %268 = vdwg.mxu0
  %vm269 = vcmp.gt.f32.partialorder %v261, 0.0
  %vm270 = vcmp.gt.f32.partialorder %v263, 0.0
  %vm271 = vcmp.gt.f32.partialorder %v265, 0.0
  %vm272 = vcmp.gt.f32.partialorder %v267, 0.0
  %v273 = vmul.f32 %v261, 0.01
  %v274 = vmul.f32 %v263, 0.01
  %v275 = vmul.f32 %v265, 0.01
  %v276 = vmul.f32 %v267, 0.01
  %v277 = vsel %vm269, %v261, %v273
  %v278 = vsel %vm270, %v263, %v274
  %v279 = vsel %vm271, %v265, %v275
  %v280 = vsel %vm272, %v267, %v276
  %v281 = vpack.c.bf16 %v279, %v277
  %v282 = vpack.c.bf16 %v280, %v278
  %v283 = vld [vmem:[%s8] sm:$0xff]
  %v284 = vld [vmem:[%s8 + $0x8] sm:$0xff]
  %v285 = vld [vmem:[%s8 + $0x10] sm:$0xff]
  %v286 = vld [vmem:[%s8 + $0x18] sm:$0xff]
  %v287 = vld [vmem:[%s8 + $0x20] sm:$0xff]
  %v288 = vld [vmem:[%s8 + $0x28] sm:$0xff]
  %v289 = vld [vmem:[%s8 + $0x30] sm:$0xff]
  %v290 = vld [vmem:[%s8 + $0x38] sm:$0xff]
  %v291 = vld [vmem:[%s8 + $0x40] sm:$0xff]
  %v292 = vld [vmem:[%s8 + $0x48] sm:$0xff]
  %v293 = vld [vmem:[%s8 + $0x50] sm:$0xff]
  %v294 = vld [vmem:[%s8 + $0x58] sm:$0xff]
  %v295 = vld [vmem:[%s8 + $0x60] sm:$0xff]
  %v296 = vld [vmem:[%s8 + $0x68] sm:$0xff]
  %v297 = vld [vmem:[%s8 + $0x70] sm:$0xff]
  %v298 = vld [vmem:[%s8 + $0x78] sm:$0xff]
  %v299 = vld [vmem:[%s8 + $0x80] sm:$0xff]
  %v300 = vld [vmem:[%s8 + $0x88] sm:$0xff]
  %v301 = vld [vmem:[%s8 + $0x90] sm:$0xff]
  %v302 = vld [vmem:[%s8 + $0x98] sm:$0xff]
  %v303 = vld [vmem:[%s8 + $0xa0] sm:$0xff]
  %v304 = vld [vmem:[%s8 + $0xa8] sm:$0xff]
  %v305 = vld [vmem:[%s8 + $0xb0] sm:$0xff]
  %v306 = vld [vmem:[%s8 + $0xb8] sm:$0xff]
  %v307 = vld [vmem:[%s8 + $0xc0] sm:$0xff]
  %v308 = vld [vmem:[%s8 + $0xc8] sm:$0xff]
  %v309 = vld [vmem:[%s8 + $0xd0] sm:$0xff]
  %v310 = vld [vmem:[%s8 + $0xd8] sm:$0xff]
  %v311 = vld [vmem:[%s8 + $0xe0] sm:$0xff]
  %v312 = vld [vmem:[%s8 + $0xe8] sm:$0xff]
  %v313 = vld [vmem:[%s8 + $0xf0] sm:$0xff]
  %v314 = vld [vmem:[%s8 + $0xf8] sm:$0xff]
  %v315 = vld [vmem:[%s9] sm:$0x3]
  %v317 = vlaneseq
  %v318 = vshrl.u32 %v317, 7
  %v319 = vsub.s32 0, %v318
  %v320 = vrot.slane %v315, %v319
  %v321 = vlaneseq
  %v322 = vshrl.u32 %v321, 7
  %v323 = vsub.s32 1, %v322
  %v324 = vrot.slane %v315, %v323
  %v359 = vunpack.c.l.b16 %v283
  %v360 = vunpack.c.h.b16 %v283
  %v361 = vunpack.c.l.b16 %v284
  %v362 = vunpack.c.h.b16 %v284
  %v363 = vunpack.c.l.b16 %v285
  %v364 = vunpack.c.h.b16 %v285
  %v365 = vunpack.c.l.b16 %v286
  %v366 = vunpack.c.h.b16 %v286
  %v367 = vunpack.c.l.b16 %v287
  %v368 = vunpack.c.h.b16 %v287
  %v369 = vunpack.c.l.b16 %v288
  %v370 = vunpack.c.h.b16 %v288
  %v371 = vunpack.c.l.b16 %v289
  %v372 = vunpack.c.h.b16 %v289
  %v373 = vunpack.c.l.b16 %v290
  %v374 = vunpack.c.h.b16 %v290
  %v375 = vunpack.c.l.b16 %v291
  %v376 = vunpack.c.h.b16 %v291
  %v377 = vunpack.c.l.b16 %v292
  %v378 = vunpack.c.h.b16 %v292
  %v379 = vunpack.c.l.b16 %v293
  %v380 = vunpack.c.h.b16 %v293
  %v381 = vunpack.c.l.b16 %v294
  %v382 = vunpack.c.h.b16 %v294
  %v383 = vunpack.c.l.b16 %v295
  %v384 = vunpack.c.h.b16 %v295
  %v385 = vunpack.c.l.b16 %v296
  %v386 = vunpack.c.h.b16 %v296
  %v387 = vunpack.c.l.b16 %v297
  %v388 = vunpack.c.h.b16 %v297
  %v389 = vunpack.c.l.b16 %v298
  %v390 = vunpack.c.h.b16 %v298
  %v391 = vunpack.c.l.b16 %v299
  %v392 = vunpack.c.h.b16 %v299
  %v393 = vunpack.c.l.b16 %v300
  %v394 = vunpack.c.h.b16 %v300
  %v395 = vunpack.c.l.b16 %v301
  %v396 = vunpack.c.h.b16 %v301
  %v397 = vunpack.c.l.b16 %v302
  %v398 = vunpack.c.h.b16 %v302
  %v399 = vunpack.c.l.b16 %v303
  %v400 = vunpack.c.h.b16 %v303
  %v401 = vunpack.c.l.b16 %v304
  %v402 = vunpack.c.h.b16 %v304
  %v403 = vunpack.c.l.b16 %v305
  %v404 = vunpack.c.h.b16 %v305
  %v405 = vunpack.c.l.b16 %v306
  %v406 = vunpack.c.h.b16 %v306
  %v407 = vunpack.c.l.b16 %v307
  %v408 = vunpack.c.h.b16 %v307
  %v409 = vunpack.c.l.b16 %v308
  %v410 = vunpack.c.h.b16 %v308
  %v411 = vunpack.c.l.b16 %v309
  %v412 = vunpack.c.h.b16 %v309
  %v413 = vunpack.c.l.b16 %v310
  %v414 = vunpack.c.h.b16 %v310
  %v415 = vunpack.c.l.b16 %v311
  %v416 = vunpack.c.h.b16 %v311
  %v417 = vunpack.c.l.b16 %v312
  %v418 = vunpack.c.h.b16 %v312
  %v419 = vunpack.c.l.b16 %v313
  %v420 = vunpack.c.h.b16 %v313
  %v421 = vunpack.c.l.b16 %v314
  %v422 = vunpack.c.h.b16 %v314
  %v423 = vpack.c.b16 %v361, %v359
  %v424 = vpack.c.b16 %v362, %v360
  %v425 = vpack.c.b16 %v365, %v363
  %v426 = vpack.c.b16 %v366, %v364
  %v427 = vpack.c.b16 %v369, %v367
  %v428 = vpack.c.b16 %v370, %v368
  %v429 = vpack.c.b16 %v373, %v371
  %v430 = vpack.c.b16 %v374, %v372
  %v431 = vpack.c.b16 %v377, %v375
  %v432 = vpack.c.b16 %v378, %v376
  %v433 = vpack.c.b16 %v381, %v379
  %v434 = vpack.c.b16 %v382, %v380
  %v435 = vpack.c.b16 %v385, %v383
  %v436 = vpack.c.b16 %v386, %v384
  %v437 = vpack.c.b16 %v389, %v387
  %v438 = vpack.c.b16 %v390, %v388
  %v439 = vpack.c.b16 %v393, %v391
  %v440 = vpack.c.b16 %v394, %v392
  %v441 = vpack.c.b16 %v397, %v395
  %v442 = vpack.c.b16 %v398, %v396
  %v443 = vpack.c.b16 %v401, %v399
  %v444 = vpack.c.b16 %v402, %v400
  %v445 = vpack.c.b16 %v405, %v403
  %v446 = vpack.c.b16 %v406, %v404
  %v447 = vpack.c.b16 %v409, %v407
  %v448 = vpack.c.b16 %v410, %v408
  %v449 = vpack.c.b16 %v413, %v411
  %v450 = vpack.c.b16 %v414, %v412
  %v451 = vpack.c.b16 %v417, %v415
  %v452 = vpack.c.b16 %v418, %v416
  %v453 = vpack.c.b16 %v421, %v419
  %v454 = vpack.c.b16 %v422, %v420
  %487 = vmatprep.subr.bf16.mxu0 %v438
  %488 = vmatpush1.bf16.msra.mxu0 %v437
  %489 = vmatprep.subr.bf16.mxu0 %v436
  %490 = vmatpush1.bf16.msra.mxu0 %v435
  %491 = vmatprep.subr.bf16.mxu0 %v434
  %492 = vmatpush1.bf16.msra.mxu0 %v433
  %493 = vmatprep.subr.bf16.mxu0 %v432
  %494 = vmatpush1.bf16.msra.mxu0 %v431
  %495 = vmatprep.subr.bf16.mxu0 %v430
  %496 = vmatpush1.bf16.msra.mxu0 %v429
  %497 = vmatprep.subr.bf16.mxu0 %v428
  %498 = vmatpush1.bf16.msra.mxu0 %v427
  %499 = vmatprep.subr.bf16.mxu0 %v426
  %500 = vmatpush1.bf16.msra.mxu0 %v425
  %501 = vmatprep.subr.bf16.mxu0 %v424
  %502 = vmatpush1.bf16.msra.mxu0 %v423
  %503 = vmatprep.subr.bf16.mxu0 %v454
  %504 = vmatpush2.bf16.msra.mxu0 %v453
  %505 = vmatprep.subr.bf16.mxu0 %v452
  %506 = vmatpush2.bf16.msra.mxu0 %v451
  %507 = vmatprep.subr.bf16.mxu0 %v450
  %508 = vmatpush2.bf16.msra.mxu0 %v449
  %509 = vmatprep.subr.bf16.mxu0 %v448
  %510 = vmatpush2.bf16.msra.mxu0 %v447
  %511 = vmatprep.subr.bf16.mxu0 %v446
  %512 = vmatpush2.bf16.msra.mxu0 %v445
  %513 = vmatprep.subr.bf16.mxu0 %v444
  %514 = vmatpush2.bf16.msra.mxu0 %v443
  %515 = vmatprep.subr.bf16.mxu0 %v442
  %516 = vmatpush2.bf16.msra.mxu0 %v441
  %517 = vmatprep.subr.bf16.mxu0 %v440
  %518 = vmatpush2.bf16.msra.mxu0 %v439
  %519 = vmatprep.mubr.bf16.mxu0 %v282
  %520 = vmatmul.mubr.bf16.gmra.mxu0 %v281
  %v521 = vpop.f32.mrf.mxu0
  %v522 = vadd.f32 %v320, %v521
  %v523 = vpop.f32.mrf.mxu0
  %v524 = vadd.f32 %v324, %v523
  %v525 = vpop.f32.mrf.mxu0
  %v526 = vadd.f32 %v320, %v525
  %v527 = vpop.f32.mrf.mxu0
  %v528 = vadd.f32 %v324, %v527
  %529 = vdwg.mxu0
  %vm530 = vcmp.gt.f32.partialorder %v522, 0.0
  %vm531 = vcmp.gt.f32.partialorder %v524, 0.0
  %vm532 = vcmp.gt.f32.partialorder %v526, 0.0
  %vm533 = vcmp.gt.f32.partialorder %v528, 0.0
  %v534 = vmul.f32 %v522, 0.01
  %v535 = vmul.f32 %v524, 0.01
  %v536 = vmul.f32 %v526, 0.01
  %v537 = vmul.f32 %v528, 0.01
  %v538 = vsel %vm530, %v522, %v534
  %v539 = vsel %vm531, %v524, %v535
  %v540 = vsel %vm532, %v526, %v536
  %v541 = vsel %vm533, %v528, %v537
  %v542 = vpack.c.bf16 %v540, %v538
  %v543 = vpack.c.bf16 %v541, %v539
  %v544 = vld [vmem:[%s10] sm:$0xff]
  %v545 = vld [vmem:[%s10 + $0x8] sm:$0xff]
  %v546 = vld [vmem:[%s10 + $0x10] sm:$0xff]
  %v547 = vld [vmem:[%s10 + $0x18] sm:$0xff]
  %v548 = vld [vmem:[%s10 + $0x20] sm:$0xff]
  %v549 = vld [vmem:[%s10 + $0x28] sm:$0xff]
  %v550 = vld [vmem:[%s10 + $0x30] sm:$0xff]
  %v551 = vld [vmem:[%s10 + $0x38] sm:$0xff]
  %v552 = vld [vmem:[%s10 + $0x40] sm:$0xff]
  %v553 = vld [vmem:[%s10 + $0x48] sm:$0xff]
  %v554 = vld [vmem:[%s10 + $0x50] sm:$0xff]
  %v555 = vld [vmem:[%s10 + $0x58] sm:$0xff]
  %v556 = vld [vmem:[%s10 + $0x60] sm:$0xff]
  %v557 = vld [vmem:[%s10 + $0x68] sm:$0xff]
  %v558 = vld [vmem:[%s10 + $0x70] sm:$0xff]
  %v559 = vld [vmem:[%s10 + $0x78] sm:$0xff]
  %v560 = vld [vmem:[%s10 + $0x80] sm:$0xff]
  %v561 = vld [vmem:[%s10 + $0x88] sm:$0xff]
  %v562 = vld [vmem:[%s10 + $0x90] sm:$0xff]
  %v563 = vld [vmem:[%s10 + $0x98] sm:$0xff]
  %v564 = vld [vmem:[%s10 + $0xa0] sm:$0xff]
  %v565 = vld [vmem:[%s10 + $0xa8] sm:$0xff]
  %v566 = vld [vmem:[%s10 + $0xb0] sm:$0xff]
  %v567 = vld [vmem:[%s10 + $0xb8] sm:$0xff]
  %v568 = vld [vmem:[%s10 + $0xc0] sm:$0xff]
  %v569 = vld [vmem:[%s10 + $0xc8] sm:$0xff]
  %v570 = vld [vmem:[%s10 + $0xd0] sm:$0xff]
  %v571 = vld [vmem:[%s10 + $0xd8] sm:$0xff]
  %v572 = vld [vmem:[%s10 + $0xe0] sm:$0xff]
  %v573 = vld [vmem:[%s10 + $0xe8] sm:$0xff]
  %v574 = vld [vmem:[%s10 + $0xf0] sm:$0xff]
  %v575 = vld [vmem:[%s10 + $0xf8] sm:$0xff]
  %v576 = vld [vmem:[%s11] sm:$0x3]
  %v578 = vlaneseq
  %v579 = vshrl.u32 %v578, 7
  %v580 = vsub.s32 0, %v579
  %v581 = vrot.slane %v576, %v580
  %v582 = vlaneseq
  %v583 = vshrl.u32 %v582, 7
  %v584 = vsub.s32 1, %v583
  %v585 = vrot.slane %v576, %v584
  %v620 = vunpack.c.l.b16 %v544
  %v621 = vunpack.c.h.b16 %v544
  %v622 = vunpack.c.l.b16 %v545
  %v623 = vunpack.c.h.b16 %v545
  %v624 = vunpack.c.l.b16 %v546
  %v625 = vunpack.c.h.b16 %v546
  %v626 = vunpack.c.l.b16 %v547
  %v627 = vunpack.c.h.b16 %v547
  %v628 = vunpack.c.l.b16 %v548
  %v629 = vunpack.c.h.b16 %v548
  %v630 = vunpack.c.l.b16 %v549
  %v631 = vunpack.c.h.b16 %v549
  %v632 = vunpack.c.l.b16 %v550
  %v633 = vunpack.c.h.b16 %v550
  %v634 = vunpack.c.l.b16 %v551
  %v635 = vunpack.c.h.b16 %v551
  %v636 = vunpack.c.l.b16 %v552
  %v637 = vunpack.c.h.b16 %v552
  %v638 = vunpack.c.l.b16 %v553
  %v639 = vunpack.c.h.b16 %v553
  %v640 = vunpack.c.l.b16 %v554
  %v641 = vunpack.c.h.b16 %v554
  %v642 = vunpack.c.l.b16 %v555
  %v643 = vunpack.c.h.b16 %v555
  %v644 = vunpack.c.l.b16 %v556
  %v645 = vunpack.c.h.b16 %v556
  %v646 = vunpack.c.l.b16 %v557
  %v647 = vunpack.c.h.b16 %v557
  %v648 = vunpack.c.l.b16 %v558
  %v649 = vunpack.c.h.b16 %v558
  %v650 = vunpack.c.l.b16 %v559
  %v651 = vunpack.c.h.b16 %v559
  %v652 = vunpack.c.l.b16 %v560
  %v653 = vunpack.c.h.b16 %v560
  %v654 = vunpack.c.l.b16 %v561
  %v655 = vunpack.c.h.b16 %v561
  %v656 = vunpack.c.l.b16 %v562
  %v657 = vunpack.c.h.b16 %v562
  %v658 = vunpack.c.l.b16 %v563
  %v659 = vunpack.c.h.b16 %v563
  %v660 = vunpack.c.l.b16 %v564
  %v661 = vunpack.c.h.b16 %v564
  %v662 = vunpack.c.l.b16 %v565
  %v663 = vunpack.c.h.b16 %v565
  %v664 = vunpack.c.l.b16 %v566
  %v665 = vunpack.c.h.b16 %v566
  %v666 = vunpack.c.l.b16 %v567
  %v667 = vunpack.c.h.b16 %v567
  %v668 = vunpack.c.l.b16 %v568
  %v669 = vunpack.c.h.b16 %v568
  %v670 = vunpack.c.l.b16 %v569
  %v671 = vunpack.c.h.b16 %v569
  %v672 = vunpack.c.l.b16 %v570
  %v673 = vunpack.c.h.b16 %v570
  %v674 = vunpack.c.l.b16 %v571
  %v675 = vunpack.c.h.b16 %v571
  %v676 = vunpack.c.l.b16 %v572
  %v677 = vunpack.c.h.b16 %v572
  %v678 = vunpack.c.l.b16 %v573
  %v679 = vunpack.c.h.b16 %v573
  %v680 = vunpack.c.l.b16 %v574
  %v681 = vunpack.c.h.b16 %v574
  %v682 = vunpack.c.l.b16 %v575
  %v683 = vunpack.c.h.b16 %v575
  %v684 = vpack.c.b16 %v622, %v620
  %v685 = vpack.c.b16 %v623, %v621
  %v686 = vpack.c.b16 %v626, %v624
  %v687 = vpack.c.b16 %v627, %v625
  %v688 = vpack.c.b16 %v630, %v628
  %v689 = vpack.c.b16 %v631, %v629
  %v690 = vpack.c.b16 %v634, %v632
  %v691 = vpack.c.b16 %v635, %v633
  %v692 = vpack.c.b16 %v638, %v636
  %v693 = vpack.c.b16 %v639, %v637
  %v694 = vpack.c.b16 %v642, %v640
  %v695 = vpack.c.b16 %v643, %v641
  %v696 = vpack.c.b16 %v646, %v644
  %v697 = vpack.c.b16 %v647, %v645
  %v698 = vpack.c.b16 %v650, %v648
  %v699 = vpack.c.b16 %v651, %v649
  %v700 = vpack.c.b16 %v654, %v652
  %v701 = vpack.c.b16 %v655, %v653
  %v702 = vpack.c.b16 %v658, %v656
  %v703 = vpack.c.b16 %v659, %v657
  %v704 = vpack.c.b16 %v662, %v660
  %v705 = vpack.c.b16 %v663, %v661
  %v706 = vpack.c.b16 %v666, %v664
  %v707 = vpack.c.b16 %v667, %v665
  %v708 = vpack.c.b16 %v670, %v668
  %v709 = vpack.c.b16 %v671, %v669
  %v710 = vpack.c.b16 %v674, %v672
  %v711 = vpack.c.b16 %v675, %v673
  %v712 = vpack.c.b16 %v678, %v676
  %v713 = vpack.c.b16 %v679, %v677
  %v714 = vpack.c.b16 %v682, %v680
  %v715 = vpack.c.b16 %v683, %v681
  %748 = vmatprep.subr.bf16.mxu0 %v699
  %749 = vmatpush1.bf16.msra.mxu0 %v698
  %750 = vmatprep.subr.bf16.mxu0 %v697
  %751 = vmatpush1.bf16.msra.mxu0 %v696
  %752 = vmatprep.subr.bf16.mxu0 %v695
  %753 = vmatpush1.bf16.msra.mxu0 %v694
  %754 = vmatprep.subr.bf16.mxu0 %v693
  %755 = vmatpush1.bf16.msra.mxu0 %v692
  %756 = vmatprep.subr.bf16.mxu0 %v691
  %757 = vmatpush1.bf16.msra.mxu0 %v690
  %758 = vmatprep.subr.bf16.mxu0 %v689
  %759 = vmatpush1.bf16.msra.mxu0 %v688
  %760 = vmatprep.subr.bf16.mxu0 %v687
  %761 = vmatpush1.bf16.msra.mxu0 %v686
  %762 = vmatprep.subr.bf16.mxu0 %v685
  %763 = vmatpush1.bf16.msra.mxu0 %v684
  %764 = vmatprep.subr.bf16.mxu0 %v715
  %765 = vmatpush2.bf16.msra.mxu0 %v714
  %766 = vmatprep.subr.bf16.mxu0 %v713
  %767 = vmatpush2.bf16.msra.mxu0 %v712
  %768 = vmatprep.subr.bf16.mxu0 %v711
  %769 = vmatpush2.bf16.msra.mxu0 %v710
  %770 = vmatprep.subr.bf16.mxu0 %v709
  %771 = vmatpush2.bf16.msra.mxu0 %v708
  %772 = vmatprep.subr.bf16.mxu0 %v707
  %773 = vmatpush2.bf16.msra.mxu0 %v706
  %774 = vmatprep.subr.bf16.mxu0 %v705
  %775 = vmatpush2.bf16.msra.mxu0 %v704
  %776 = vmatprep.subr.bf16.mxu0 %v703
  %777 = vmatpush2.bf16.msra.mxu0 %v702
  %778 = vmatprep.subr.bf16.mxu0 %v701
  %779 = vmatpush2.bf16.msra.mxu0 %v700
  %780 = vmatprep.mubr.bf16.mxu0 %v543
  %781 = vmatmul.mubr.bf16.gmra.mxu0 %v542
  %v782 = vpop.f32.mrf.mxu0
  %v783 = vadd.f32 %v581, %v782
  %v784 = vpop.f32.mrf.mxu0
  %v785 = vadd.f32 %v585, %v784
  %v786 = vpop.f32.mrf.mxu0
  %v787 = vadd.f32 %v581, %v786
  %v788 = vpop.f32.mrf.mxu0
  %v789 = vadd.f32 %v585, %v788
  %790 = vdwg.mxu0
  %vm791 = vcmp.gt.f32.partialorder %v783, 0.0
  %vm792 = vcmp.gt.f32.partialorder %v785, 0.0
  %vm793 = vcmp.gt.f32.partialorder %v787, 0.0
  %vm794 = vcmp.gt.f32.partialorder %v789, 0.0
  %v795 = vmul.f32 %v783, 0.01
  %v796 = vmul.f32 %v785, 0.01
  %v797 = vmul.f32 %v787, 0.01
  %v798 = vmul.f32 %v789, 0.01
  %v799 = vsel %vm791, %v783, %v795
  %v800 = vsel %vm792, %v785, %v796
  %v801 = vsel %vm793, %v787, %v797
  %v802 = vsel %vm794, %v789, %v798
  %v803 = vpack.c.bf16 %v801, %v799
  %v804 = vpack.c.bf16 %v802, %v800
  %v805 = vld [vmem:[%s12] sm:$0xff]
  %v806 = vld [vmem:[%s12 + $0x8] sm:$0xff]
  %v807 = vld [vmem:[%s12 + $0x10] sm:$0xff]
  %v808 = vld [vmem:[%s12 + $0x18] sm:$0xff]
  %v809 = vld [vmem:[%s12 + $0x20] sm:$0xff]
  %v810 = vld [vmem:[%s12 + $0x28] sm:$0xff]
  %v811 = vld [vmem:[%s12 + $0x30] sm:$0xff]
  %v812 = vld [vmem:[%s12 + $0x38] sm:$0xff]
  %v813 = vld [vmem:[%s12 + $0x40] sm:$0xff]
  %v814 = vld [vmem:[%s12 + $0x48] sm:$0xff]
  %v815 = vld [vmem:[%s12 + $0x50] sm:$0xff]
  %v816 = vld [vmem:[%s12 + $0x58] sm:$0xff]
  %v817 = vld [vmem:[%s12 + $0x60] sm:$0xff]
  %v818 = vld [vmem:[%s12 + $0x68] sm:$0xff]
  %v819 = vld [vmem:[%s12 + $0x70] sm:$0xff]
  %v820 = vld [vmem:[%s12 + $0x78] sm:$0xff]
  %v821 = vld [vmem:[%s12 + $0x80] sm:$0xff]
  %v822 = vld [vmem:[%s12 + $0x88] sm:$0xff]
  %v823 = vld [vmem:[%s12 + $0x90] sm:$0xff]
  %v824 = vld [vmem:[%s12 + $0x98] sm:$0xff]
  %v825 = vld [vmem:[%s12 + $0xa0] sm:$0xff]
  %v826 = vld [vmem:[%s12 + $0xa8] sm:$0xff]
  %v827 = vld [vmem:[%s12 + $0xb0] sm:$0xff]
  %v828 = vld [vmem:[%s12 + $0xb8] sm:$0xff]
  %v829 = vld [vmem:[%s12 + $0xc0] sm:$0xff]
  %v830 = vld [vmem:[%s12 + $0xc8] sm:$0xff]
  %v831 = vld [vmem:[%s12 + $0xd0] sm:$0xff]
  %v832 = vld [vmem:[%s12 + $0xd8] sm:$0xff]
  %v833 = vld [vmem:[%s12 + $0xe0] sm:$0xff]
  %v834 = vld [vmem:[%s12 + $0xe8] sm:$0xff]
  %v835 = vld [vmem:[%s12 + $0xf0] sm:$0xff]
  %v836 = vld [vmem:[%s12 + $0xf8] sm:$0xff]
  %v837 = vld [vmem:[%s13] sm:$0x3]
  %v839 = vlaneseq
  %v840 = vshrl.u32 %v839, 7
  %v841 = vsub.s32 0, %v840
  %v842 = vrot.slane %v837, %v841
  %v843 = vlaneseq
  %v844 = vshrl.u32 %v843, 7
  %v845 = vsub.s32 1, %v844
  %v846 = vrot.slane %v837, %v845
  %v881 = vunpack.c.l.b16 %v805
  %v882 = vunpack.c.h.b16 %v805
  %v883 = vunpack.c.l.b16 %v806
  %v884 = vunpack.c.h.b16 %v806
  %v885 = vunpack.c.l.b16 %v807
  %v886 = vunpack.c.h.b16 %v807
  %v887 = vunpack.c.l.b16 %v808
  %v888 = vunpack.c.h.b16 %v808
  %v889 = vunpack.c.l.b16 %v809
  %v890 = vunpack.c.h.b16 %v809
  %v891 = vunpack.c.l.b16 %v810
  %v892 = vunpack.c.h.b16 %v810
  %v893 = vunpack.c.l.b16 %v811
  %v894 = vunpack.c.h.b16 %v811
  %v895 = vunpack.c.l.b16 %v812
  %v896 = vunpack.c.h.b16 %v812
  %v897 = vunpack.c.l.b16 %v813
  %v898 = vunpack.c.h.b16 %v813
  %v899 = vunpack.c.l.b16 %v814
  %v900 = vunpack.c.h.b16 %v814
  %v901 = vunpack.c.l.b16 %v815
  %v902 = vunpack.c.h.b16 %v815
  %v903 = vunpack.c.l.b16 %v816
  %v904 = vunpack.c.h.b16 %v816
  %v905 = vunpack.c.l.b16 %v817
  %v906 = vunpack.c.h.b16 %v817
  %v907 = vunpack.c.l.b16 %v818
  %v908 = vunpack.c.h.b16 %v818
  %v909 = vunpack.c.l.b16 %v819
  %v910 = vunpack.c.h.b16 %v819
  %v911 = vunpack.c.l.b16 %v820
  %v912 = vunpack.c.h.b16 %v820
  %v913 = vunpack.c.l.b16 %v821
  %v914 = vunpack.c.h.b16 %v821
  %v915 = vunpack.c.l.b16 %v822
  %v916 = vunpack.c.h.b16 %v822
  %v917 = vunpack.c.l.b16 %v823
  %v918 = vunpack.c.h.b16 %v823
  %v919 = vunpack.c.l.b16 %v824
  %v920 = vunpack.c.h.b16 %v824
  %v921 = vunpack.c.l.b16 %v825
  %v922 = vunpack.c.h.b16 %v825
  %v923 = vunpack.c.l.b16 %v826
  %v924 = vunpack.c.h.b16 %v826
  %v925 = vunpack.c.l.b16 %v827
  %v926 = vunpack.c.h.b16 %v827
  %v927 = vunpack.c.l.b16 %v828
  %v928 = vunpack.c.h.b16 %v828
  %v929 = vunpack.c.l.b16 %v829
  %v930 = vunpack.c.h.b16 %v829
  %v931 = vunpack.c.l.b16 %v830
  %v932 = vunpack.c.h.b16 %v830
  %v933 = vunpack.c.l.b16 %v831
  %v934 = vunpack.c.h.b16 %v831
  %v935 = vunpack.c.l.b16 %v832
  %v936 = vunpack.c.h.b16 %v832
  %v937 = vunpack.c.l.b16 %v833
  %v938 = vunpack.c.h.b16 %v833
  %v939 = vunpack.c.l.b16 %v834
  %v940 = vunpack.c.h.b16 %v834
  %v941 = vunpack.c.l.b16 %v835
  %v942 = vunpack.c.h.b16 %v835
  %v943 = vunpack.c.l.b16 %v836
  %v944 = vunpack.c.h.b16 %v836
  %v945 = vpack.c.b16 %v883, %v881
  %v946 = vpack.c.b16 %v884, %v882
  %v947 = vpack.c.b16 %v887, %v885
  %v948 = vpack.c.b16 %v888, %v886
  %v949 = vpack.c.b16 %v891, %v889
  %v950 = vpack.c.b16 %v892, %v890
  %v951 = vpack.c.b16 %v895, %v893
  %v952 = vpack.c.b16 %v896, %v894
  %v953 = vpack.c.b16 %v899, %v897
  %v954 = vpack.c.b16 %v900, %v898
  %v955 = vpack.c.b16 %v903, %v901
  %v956 = vpack.c.b16 %v904, %v902
  %v957 = vpack.c.b16 %v907, %v905
  %v958 = vpack.c.b16 %v908, %v906
  %v959 = vpack.c.b16 %v911, %v909
  %v960 = vpack.c.b16 %v912, %v910
  %v961 = vpack.c.b16 %v915, %v913
  %v962 = vpack.c.b16 %v916, %v914
  %v963 = vpack.c.b16 %v919, %v917
  %v964 = vpack.c.b16 %v920, %v918
  %v965 = vpack.c.b16 %v923, %v921
  %v966 = vpack.c.b16 %v924, %v922
  %v967 = vpack.c.b16 %v927, %v925
  %v968 = vpack.c.b16 %v928, %v926
  %v969 = vpack.c.b16 %v931, %v929
  %v970 = vpack.c.b16 %v932, %v930
  %v971 = vpack.c.b16 %v935, %v933
  %v972 = vpack.c.b16 %v936, %v934
  %v973 = vpack.c.b16 %v939, %v937
  %v974 = vpack.c.b16 %v940, %v938
  %v975 = vpack.c.b16 %v943, %v941
  %v976 = vpack.c.b16 %v944, %v942
  %1009 = vmatprep.subr.bf16.mxu0 %v960
  %1010 = vmatpush1.bf16.msra.mxu0 %v959
  %1011 = vmatprep.subr.bf16.mxu0 %v958
  %1012 = vmatpush1.bf16.msra.mxu0 %v957
  %1013 = vmatprep.subr.bf16.mxu0 %v956
  %1014 = vmatpush1.bf16.msra.mxu0 %v955
  %1015 = vmatprep.subr.bf16.mxu0 %v954
  %1016 = vmatpush1.bf16.msra.mxu0 %v953
  %1017 = vmatprep.subr.bf16.mxu0 %v952
  %1018 = vmatpush1.bf16.msra.mxu0 %v951
  %1019 = vmatprep.subr.bf16.mxu0 %v950
  %1020 = vmatpush1.bf16.msra.mxu0 %v949
  %1021 = vmatprep.subr.bf16.mxu0 %v948
  %1022 = vmatpush1.bf16.msra.mxu0 %v947
  %1023 = vmatprep.subr.bf16.mxu0 %v946
  %1024 = vmatpush1.bf16.msra.mxu0 %v945
  %1025 = vmatprep.subr.bf16.mxu0 %v976
  %1026 = vmatpush2.bf16.msra.mxu0 %v975
  %1027 = vmatprep.subr.bf16.mxu0 %v974
  %1028 = vmatpush2.bf16.msra.mxu0 %v973
  %1029 = vmatprep.subr.bf16.mxu0 %v972
  %1030 = vmatpush2.bf16.msra.mxu0 %v971
  %1031 = vmatprep.subr.bf16.mxu0 %v970
  %1032 = vmatpush2.bf16.msra.mxu0 %v969
  %1033 = vmatprep.subr.bf16.mxu0 %v968
  %1034 = vmatpush2.bf16.msra.mxu0 %v967
  %1035 = vmatprep.subr.bf16.mxu0 %v966
  %1036 = vmatpush2.bf16.msra.mxu0 %v965
  %1037 = vmatprep.subr.bf16.mxu0 %v964
  %1038 = vmatpush2.bf16.msra.mxu0 %v963
  %1039 = vmatprep.subr.bf16.mxu0 %v962
  %1040 = vmatpush2.bf16.msra.mxu0 %v961
  %1041 = vmatprep.mubr.bf16.mxu0 %v804
  %1042 = vmatmul.mubr.bf16.gmra.mxu0 %v803
  %v1043 = vpop.f32.mrf.mxu0
  %v1044 = vadd.f32 %v842, %v1043
  %v1045 = vpop.f32.mrf.mxu0
  %v1046 = vadd.f32 %v846, %v1045
  %v1047 = vpop.f32.mrf.mxu0
  %v1048 = vadd.f32 %v842, %v1047
  %v1049 = vpop.f32.mrf.mxu0
  %v1050 = vadd.f32 %v846, %v1049
  %1051 = vdwg.mxu0
  %v1052 = vtanh.pop %v1044
  %v1053 = vtanh.pop %v1048
  %v1054 = vmul.f32 %v1052, 1.442695
  %v1055 = vpow.pop %v1054
  %v1056 = vmul.f32 %v1053, 1.442695
  %v1057 = vpow.pop %v1056
  %v1058 = vmul.f32 %v115, %v1055
  %v1059 = vmul.f32 %v116, %v1057
  %v1060 = vadd.f32 %v1058, %v1046
  %v1061 = vadd.f32 %v1059, %v1050
  %1062 = vadd.xlane.f32.xlu0 %v1052
  %v1063 = vpop.xlane.xlu0 %1062
  %1064 = vadd.xlane.f32.xlu0 %v1053
  %v1065 = vpop.xlane.xlu0 %1064
  %v1066 = vpack.c.bf16 %v1061, %v1060
  %v1067 = vld [vmem:[%s14] sm:$0xff]
  %v1068 = vld [vmem:[%s14 + $0x8] sm:$0xff]
  %v1069 = vld [vmem:[%s14 + $0x10] sm:$0xff]
  %v1070 = vld [vmem:[%s14 + $0x18] sm:$0xff]
  %v1071 = vld [vmem:[%s14 + $0x20] sm:$0xff]
  %v1072 = vld [vmem:[%s14 + $0x28] sm:$0xff]
  %v1073 = vld [vmem:[%s14 + $0x30] sm:$0xff]
  %v1074 = vld [vmem:[%s14 + $0x38] sm:$0xff]
  %v1075 = vld [vmem:[%s14 + $0x40] sm:$0xff]
  %v1076 = vld [vmem:[%s14 + $0x48] sm:$0xff]
  %v1077 = vld [vmem:[%s14 + $0x50] sm:$0xff]
  %v1078 = vld [vmem:[%s14 + $0x58] sm:$0xff]
  %v1079 = vld [vmem:[%s14 + $0x60] sm:$0xff]
  %v1080 = vld [vmem:[%s14 + $0x68] sm:$0xff]
  %v1081 = vld [vmem:[%s14 + $0x70] sm:$0xff]
  %v1082 = vld [vmem:[%s14 + $0x78] sm:$0xff]
  %v1083 = vld [vmem:[%s15] sm:$0x3]
  %v1085 = vlaneseq
  %v1086 = vshrl.u32 %v1085, 7
  %v1087 = vsub.s32 0, %v1086
  %v1088 = vrot.slane %v1083, %v1087
  %v1089 = vlaneseq
  %v1090 = vshrl.u32 %v1089, 7
  %v1091 = vsub.s32 1, %v1090
  %v1092 = vrot.slane %v1083, %v1091
  %v1111 = vunpack.c.l.b16 %v1067
  %v1112 = vunpack.c.h.b16 %v1067
  %v1113 = vunpack.c.l.b16 %v1068
  %v1114 = vunpack.c.h.b16 %v1068
  %v1115 = vunpack.c.l.b16 %v1069
  %v1116 = vunpack.c.h.b16 %v1069
  %v1117 = vunpack.c.l.b16 %v1070
  %v1118 = vunpack.c.h.b16 %v1070
  %v1119 = vunpack.c.l.b16 %v1071
  %v1120 = vunpack.c.h.b16 %v1071
  %v1121 = vunpack.c.l.b16 %v1072
  %v1122 = vunpack.c.h.b16 %v1072
  %v1123 = vunpack.c.l.b16 %v1073
  %v1124 = vunpack.c.h.b16 %v1073
  %v1125 = vunpack.c.l.b16 %v1074
  %v1126 = vunpack.c.h.b16 %v1074
  %v1127 = vunpack.c.l.b16 %v1075
  %v1128 = vunpack.c.h.b16 %v1075
  %v1129 = vunpack.c.l.b16 %v1076
  %v1130 = vunpack.c.h.b16 %v1076
  %v1131 = vunpack.c.l.b16 %v1077
  %v1132 = vunpack.c.h.b16 %v1077
  %v1133 = vunpack.c.l.b16 %v1078
  %v1134 = vunpack.c.h.b16 %v1078
  %v1135 = vunpack.c.l.b16 %v1079
  %v1136 = vunpack.c.h.b16 %v1079
  %v1137 = vunpack.c.l.b16 %v1080
  %v1138 = vunpack.c.h.b16 %v1080
  %v1139 = vunpack.c.l.b16 %v1081
  %v1140 = vunpack.c.h.b16 %v1081
  %v1141 = vunpack.c.l.b16 %v1082
  %v1142 = vunpack.c.h.b16 %v1082
  %v1143 = vpack.c.b16 %v1113, %v1111
  %v1144 = vpack.c.b16 %v1114, %v1112
  %v1145 = vpack.c.b16 %v1117, %v1115
  %v1146 = vpack.c.b16 %v1118, %v1116
  %v1147 = vpack.c.b16 %v1121, %v1119
  %v1148 = vpack.c.b16 %v1122, %v1120
  %v1149 = vpack.c.b16 %v1125, %v1123
  %v1150 = vpack.c.b16 %v1126, %v1124
  %v1151 = vpack.c.b16 %v1129, %v1127
  %v1152 = vpack.c.b16 %v1130, %v1128
  %v1153 = vpack.c.b16 %v1133, %v1131
  %v1154 = vpack.c.b16 %v1134, %v1132
  %v1155 = vpack.c.b16 %v1137, %v1135
  %v1156 = vpack.c.b16 %v1138, %v1136
  %v1157 = vpack.c.b16 %v1141, %v1139
  %v1158 = vpack.c.b16 %v1142, %v1140
  %1175 = vmatprep.subr.bf16.mxu0 %v1158
  %1176 = vmatpush1.bf16.msra.mxu0 %v1157
  %1177 = vmatprep.subr.bf16.mxu0 %v1156
  %1178 = vmatpush1.bf16.msra.mxu0 %v1155
  %1179 = vmatprep.subr.bf16.mxu0 %v1154
  %1180 = vmatpush1.bf16.msra.mxu0 %v1153
  %1181 = vmatprep.subr.bf16.mxu0 %v1152
  %1182 = vmatpush1.bf16.msra.mxu0 %v1151
  %1183 = vmatprep.subr.bf16.mxu0 %v1150
  %1184 = vmatpush1.bf16.msra.mxu0 %v1149
  %1185 = vmatprep.subr.bf16.mxu0 %v1148
  %1186 = vmatpush1.bf16.msra.mxu0 %v1147
  %1187 = vmatprep.subr.bf16.mxu0 %v1146
  %1188 = vmatpush1.bf16.msra.mxu0 %v1145
  %1189 = vmatprep.subr.bf16.mxu0 %v1144
  %1190 = vmatpush1.bf16.msra.mxu0 %v1143
  %1191 = vmatprep.subr.bf16.mxu0 0
  %1192 = vmatpush2.bf16.msra.mxu0 0
  %1193 = vmatprep.subr.bf16.mxu0 0
  %1194 = vmatpush2.bf16.msra.mxu0 0
  %1195 = vmatprep.subr.bf16.mxu0 0
  %1196 = vmatpush2.bf16.msra.mxu0 0
  %1197 = vmatprep.subr.bf16.mxu0 0
  %1198 = vmatpush2.bf16.msra.mxu0 0
  %1199 = vmatprep.subr.bf16.mxu0 0
  %1200 = vmatpush2.bf16.msra.mxu0 0
  %1201 = vmatprep.subr.bf16.mxu0 0
  %1202 = vmatpush2.bf16.msra.mxu0 0
  %1203 = vmatprep.subr.bf16.mxu0 0
  %1204 = vmatpush2.bf16.msra.mxu0 0
  %1205 = vmatprep.subr.bf16.mxu0 0
  %1206 = vmatpush2.bf16.msra.mxu0 0
  %1207 = vmatprep.mubr.bf16.mxu0 0
  %1208 = vmatmul.mubr.bf16.gmra.mxu0 %v1066
  %v1209 = vpop.f32.mrf.mxu0
  %v1210 = vadd.f32 %v1088, %v1209
  %v1211 = vpop.f32.mrf.mxu0
  %v1212 = vadd.f32 %v1092, %v1211
  %v1213 = vpop.f32.mrf.mxu0
  %v1214 = vadd.f32 %v1088, %v1213
  %v1215 = vpop.f32.mrf.mxu0
  %v1216 = vadd.f32 %v1092, %v1215
  %1217 = vdwg.mxu0
  %vm1218 = vcmp.gt.f32.partialorder %v1210, 0.0
  %vm1219 = vcmp.gt.f32.partialorder %v1212, 0.0
  %vm1220 = vcmp.gt.f32.partialorder %v1214, 0.0
  %vm1221 = vcmp.gt.f32.partialorder %v1216, 0.0
  %v1222 = vmul.f32 %v1210, 0.01
  %v1223 = vmul.f32 %v1212, 0.01
  %v1224 = vmul.f32 %v1214, 0.01
  %v1225 = vmul.f32 %v1216, 0.01
  %v1226 = vsel %vm1218, %v1210, %v1222
  %v1227 = vsel %vm1219, %v1212, %v1223
  %v1228 = vsel %vm1220, %v1214, %v1224
  %v1229 = vsel %vm1221, %v1216, %v1225
  %v1230 = vpack.c.bf16 %v1228, %v1226
  %v1231 = vpack.c.bf16 %v1229, %v1227
  %v1232 = vld [vmem:[%s16] sm:$0xff]
  %v1233 = vld [vmem:[%s16 + $0x8] sm:$0xff]
  %v1234 = vld [vmem:[%s16 + $0x10] sm:$0xff]
  %v1235 = vld [vmem:[%s16 + $0x18] sm:$0xff]
  %v1236 = vld [vmem:[%s16 + $0x20] sm:$0xff]
  %v1237 = vld [vmem:[%s16 + $0x28] sm:$0xff]
  %v1238 = vld [vmem:[%s16 + $0x30] sm:$0xff]
  %v1239 = vld [vmem:[%s16 + $0x38] sm:$0xff]
  %v1240 = vld [vmem:[%s16 + $0x40] sm:$0xff]
  %v1241 = vld [vmem:[%s16 + $0x48] sm:$0xff]
  %v1242 = vld [vmem:[%s16 + $0x50] sm:$0xff]
  %v1243 = vld [vmem:[%s16 + $0x58] sm:$0xff]
  %v1244 = vld [vmem:[%s16 + $0x60] sm:$0xff]
  %v1245 = vld [vmem:[%s16 + $0x68] sm:$0xff]
  %v1246 = vld [vmem:[%s16 + $0x70] sm:$0xff]
  %v1247 = vld [vmem:[%s16 + $0x78] sm:$0xff]
  %v1248 = vld [vmem:[%s16 + $0x80] sm:$0xff]
  %v1249 = vld [vmem:[%s16 + $0x88] sm:$0xff]
  %v1250 = vld [vmem:[%s16 + $0x90] sm:$0xff]
  %v1251 = vld [vmem:[%s16 + $0x98] sm:$0xff]
  %v1252 = vld [vmem:[%s16 + $0xa0] sm:$0xff]
  %v1253 = vld [vmem:[%s16 + $0xa8] sm:$0xff]
  %v1254 = vld [vmem:[%s16 + $0xb0] sm:$0xff]
  %v1255 = vld [vmem:[%s16 + $0xb8] sm:$0xff]
  %v1256 = vld [vmem:[%s16 + $0xc0] sm:$0xff]
  %v1257 = vld [vmem:[%s16 + $0xc8] sm:$0xff]
  %v1258 = vld [vmem:[%s16 + $0xd0] sm:$0xff]
  %v1259 = vld [vmem:[%s16 + $0xd8] sm:$0xff]
  %v1260 = vld [vmem:[%s16 + $0xe0] sm:$0xff]
  %v1261 = vld [vmem:[%s16 + $0xe8] sm:$0xff]
  %v1262 = vld [vmem:[%s16 + $0xf0] sm:$0xff]
  %v1263 = vld [vmem:[%s16 + $0xf8] sm:$0xff]
  %v1264 = vld [vmem:[%s17] sm:$0x3]
  %v1266 = vlaneseq
  %v1267 = vshrl.u32 %v1266, 7
  %v1268 = vsub.s32 0, %v1267
  %v1269 = vrot.slane %v1264, %v1268
  %v1270 = vlaneseq
  %v1271 = vshrl.u32 %v1270, 7
  %v1272 = vsub.s32 1, %v1271
  %v1273 = vrot.slane %v1264, %v1272
  %v1308 = vunpack.c.l.b16 %v1232
  %v1309 = vunpack.c.h.b16 %v1232
  %v1310 = vunpack.c.l.b16 %v1233
  %v1311 = vunpack.c.h.b16 %v1233
  %v1312 = vunpack.c.l.b16 %v1234
  %v1313 = vunpack.c.h.b16 %v1234
  %v1314 = vunpack.c.l.b16 %v1235
  %v1315 = vunpack.c.h.b16 %v1235
  %v1316 = vunpack.c.l.b16 %v1236
  %v1317 = vunpack.c.h.b16 %v1236
  %v1318 = vunpack.c.l.b16 %v1237
  %v1319 = vunpack.c.h.b16 %v1237
  %v1320 = vunpack.c.l.b16 %v1238
  %v1321 = vunpack.c.h.b16 %v1238
  %v1322 = vunpack.c.l.b16 %v1239
  %v1323 = vunpack.c.h.b16 %v1239
  %v1324 = vunpack.c.l.b16 %v1240
  %v1325 = vunpack.c.h.b16 %v1240
  %v1326 = vunpack.c.l.b16 %v1241
  %v1327 = vunpack.c.h.b16 %v1241
  %v1328 = vunpack.c.l.b16 %v1242
  %v1329 = vunpack.c.h.b16 %v1242
  %v1330 = vunpack.c.l.b16 %v1243
  %v1331 = vunpack.c.h.b16 %v1243
  %v1332 = vunpack.c.l.b16 %v1244
  %v1333 = vunpack.c.h.b16 %v1244
  %v1334 = vunpack.c.l.b16 %v1245
  %v1335 = vunpack.c.h.b16 %v1245
  %v1336 = vunpack.c.l.b16 %v1246
  %v1337 = vunpack.c.h.b16 %v1246
  %v1338 = vunpack.c.l.b16 %v1247
  %v1339 = vunpack.c.h.b16 %v1247
  %v1340 = vunpack.c.l.b16 %v1248
  %v1341 = vunpack.c.h.b16 %v1248
  %v1342 = vunpack.c.l.b16 %v1249
  %v1343 = vunpack.c.h.b16 %v1249
  %v1344 = vunpack.c.l.b16 %v1250
  %v1345 = vunpack.c.h.b16 %v1250
  %v1346 = vunpack.c.l.b16 %v1251
  %v1347 = vunpack.c.h.b16 %v1251
  %v1348 = vunpack.c.l.b16 %v1252
  %v1349 = vunpack.c.h.b16 %v1252
  %v1350 = vunpack.c.l.b16 %v1253
  %v1351 = vunpack.c.h.b16 %v1253
  %v1352 = vunpack.c.l.b16 %v1254
  %v1353 = vunpack.c.h.b16 %v1254
  %v1354 = vunpack.c.l.b16 %v1255
  %v1355 = vunpack.c.h.b16 %v1255
  %v1356 = vunpack.c.l.b16 %v1256
  %v1357 = vunpack.c.h.b16 %v1256
  %v1358 = vunpack.c.l.b16 %v1257
  %v1359 = vunpack.c.h.b16 %v1257
  %v1360 = vunpack.c.l.b16 %v1258
  %v1361 = vunpack.c.h.b16 %v1258
  %v1362 = vunpack.c.l.b16 %v1259
  %v1363 = vunpack.c.h.b16 %v1259
  %v1364 = vunpack.c.l.b16 %v1260
  %v1365 = vunpack.c.h.b16 %v1260
  %v1366 = vunpack.c.l.b16 %v1261
  %v1367 = vunpack.c.h.b16 %v1261
  %v1368 = vunpack.c.l.b16 %v1262
  %v1369 = vunpack.c.h.b16 %v1262
  %v1370 = vunpack.c.l.b16 %v1263
  %v1371 = vunpack.c.h.b16 %v1263
  %v1372 = vpack.c.b16 %v1310, %v1308
  %v1373 = vpack.c.b16 %v1311, %v1309
  %v1374 = vpack.c.b16 %v1314, %v1312
  %v1375 = vpack.c.b16 %v1315, %v1313
  %v1376 = vpack.c.b16 %v1318, %v1316
  %v1377 = vpack.c.b16 %v1319, %v1317
  %v1378 = vpack.c.b16 %v1322, %v1320
  %v1379 = vpack.c.b16 %v1323, %v1321
  %v1380 = vpack.c.b16 %v1326, %v1324
  %v1381 = vpack.c.b16 %v1327, %v1325
  %v1382 = vpack.c.b16 %v1330, %v1328
  %v1383 = vpack.c.b16 %v1331, %v1329
  %v1384 = vpack.c.b16 %v1334, %v1332
  %v1385 = vpack.c.b16 %v1335, %v1333
  %v1386 = vpack.c.b16 %v1338, %v1336
  %v1387 = vpack.c.b16 %v1339, %v1337
  %v1388 = vpack.c.b16 %v1342, %v1340
  %v1389 = vpack.c.b16 %v1343, %v1341
  %v1390 = vpack.c.b16 %v1346, %v1344
  %v1391 = vpack.c.b16 %v1347, %v1345
  %v1392 = vpack.c.b16 %v1350, %v1348
  %v1393 = vpack.c.b16 %v1351, %v1349
  %v1394 = vpack.c.b16 %v1354, %v1352
  %v1395 = vpack.c.b16 %v1355, %v1353
  %v1396 = vpack.c.b16 %v1358, %v1356
  %v1397 = vpack.c.b16 %v1359, %v1357
  %v1398 = vpack.c.b16 %v1362, %v1360
  %v1399 = vpack.c.b16 %v1363, %v1361
  %v1400 = vpack.c.b16 %v1366, %v1364
  %v1401 = vpack.c.b16 %v1367, %v1365
  %v1402 = vpack.c.b16 %v1370, %v1368
  %v1403 = vpack.c.b16 %v1371, %v1369
  %1436 = vmatprep.subr.bf16.mxu0 %v1387
  %1437 = vmatpush1.bf16.msra.mxu0 %v1386
  %1438 = vmatprep.subr.bf16.mxu0 %v1385
  %1439 = vmatpush1.bf16.msra.mxu0 %v1384
  %1440 = vmatprep.subr.bf16.mxu0 %v1383
  %1441 = vmatpush1.bf16.msra.mxu0 %v1382
  %1442 = vmatprep.subr.bf16.mxu0 %v1381
  %1443 = vmatpush1.bf16.msra.mxu0 %v1380
  %1444 = vmatprep.subr.bf16.mxu0 %v1379
  %1445 = vmatpush1.bf16.msra.mxu0 %v1378
  %1446 = vmatprep.subr.bf16.mxu0 %v1377
  %1447 = vmatpush1.bf16.msra.mxu0 %v1376
  %1448 = vmatprep.subr.bf16.mxu0 %v1375
  %1449 = vmatpush1.bf16.msra.mxu0 %v1374
  %1450 = vmatprep.subr.bf16.mxu0 %v1373
  %1451 = vmatpush1.bf16.msra.mxu0 %v1372
  %1452 = vmatprep.subr.bf16.mxu0 %v1403
  %1453 = vmatpush2.bf16.msra.mxu0 %v1402
  %1454 = vmatprep.subr.bf16.mxu0 %v1401
  %1455 = vmatpush2.bf16.msra.mxu0 %v1400
  %1456 = vmatprep.subr.bf16.mxu0 %v1399
  %1457 = vmatpush2.bf16.msra.mxu0 %v1398
  %1458 = vmatprep.subr.bf16.mxu0 %v1397
  %1459 = vmatpush2.bf16.msra.mxu0 %v1396
  %1460 = vmatprep.subr.bf16.mxu0 %v1395
  %1461 = vmatpush2.bf16.msra.mxu0 %v1394
  %1462 = vmatprep.subr.bf16.mxu0 %v1393
  %1463 = vmatpush2.bf16.msra.mxu0 %v1392
  %1464 = vmatprep.subr.bf16.mxu0 %v1391
  %1465 = vmatpush2.bf16.msra.mxu0 %v1390
  %1466 = vmatprep.subr.bf16.mxu0 %v1389
  %1467 = vmatpush2.bf16.msra.mxu0 %v1388
  %1468 = vmatprep.mubr.bf16.mxu0 %v1231
  %1469 = vmatmul.mubr.bf16.gmra.mxu0 %v1230
  %v1470 = vpop.f32.mrf.mxu0
  %v1471 = vadd.f32 %v1269, %v1470
  %v1472 = vpop.f32.mrf.mxu0
  %v1473 = vadd.f32 %v1273, %v1472
  %v1474 = vpop.f32.mrf.mxu0
  %v1475 = vadd.f32 %v1269, %v1474
  %v1476 = vpop.f32.mrf.mxu0
  %v1477 = vadd.f32 %v1273, %v1476
  %1478 = vdwg.mxu0
  %vm1479 = vcmp.gt.f32.partialorder %v1471, 0.0
  %vm1480 = vcmp.gt.f32.partialorder %v1473, 0.0
  %vm1481 = vcmp.gt.f32.partialorder %v1475, 0.0
  %vm1482 = vcmp.gt.f32.partialorder %v1477, 0.0
  %v1483 = vmul.f32 %v1471, 0.01
  %v1484 = vmul.f32 %v1473, 0.01
  %v1485 = vmul.f32 %v1475, 0.01
  %v1486 = vmul.f32 %v1477, 0.01
  %v1487 = vsel %vm1479, %v1471, %v1483
  %v1488 = vsel %vm1480, %v1473, %v1484
  %v1489 = vsel %vm1481, %v1475, %v1485
  %v1490 = vsel %vm1482, %v1477, %v1486
  %v1491 = vpack.c.bf16 %v1489, %v1487
  %v1492 = vpack.c.bf16 %v1490, %v1488
  %v1493 = vld [vmem:[%s18] sm:$0xff]
  %v1494 = vld [vmem:[%s18 + $0x8] sm:$0xff]
  %v1495 = vld [vmem:[%s18 + $0x10] sm:$0xff]
  %v1496 = vld [vmem:[%s18 + $0x18] sm:$0xff]
  %v1497 = vld [vmem:[%s18 + $0x20] sm:$0xff]
  %v1498 = vld [vmem:[%s18 + $0x28] sm:$0xff]
  %v1499 = vld [vmem:[%s18 + $0x30] sm:$0xff]
  %v1500 = vld [vmem:[%s18 + $0x38] sm:$0xff]
  %v1501 = vld [vmem:[%s18 + $0x40] sm:$0xff]
  %v1502 = vld [vmem:[%s18 + $0x48] sm:$0xff]
  %v1503 = vld [vmem:[%s18 + $0x50] sm:$0xff]
  %v1504 = vld [vmem:[%s18 + $0x58] sm:$0xff]
  %v1505 = vld [vmem:[%s18 + $0x60] sm:$0xff]
  %v1506 = vld [vmem:[%s18 + $0x68] sm:$0xff]
  %v1507 = vld [vmem:[%s18 + $0x70] sm:$0xff]
  %v1508 = vld [vmem:[%s18 + $0x78] sm:$0xff]
  %v1509 = vld [vmem:[%s18 + $0x80] sm:$0xff]
  %v1510 = vld [vmem:[%s18 + $0x88] sm:$0xff]
  %v1511 = vld [vmem:[%s18 + $0x90] sm:$0xff]
  %v1512 = vld [vmem:[%s18 + $0x98] sm:$0xff]
  %v1513 = vld [vmem:[%s18 + $0xa0] sm:$0xff]
  %v1514 = vld [vmem:[%s18 + $0xa8] sm:$0xff]
  %v1515 = vld [vmem:[%s18 + $0xb0] sm:$0xff]
  %v1516 = vld [vmem:[%s18 + $0xb8] sm:$0xff]
  %v1517 = vld [vmem:[%s18 + $0xc0] sm:$0xff]
  %v1518 = vld [vmem:[%s18 + $0xc8] sm:$0xff]
  %v1519 = vld [vmem:[%s18 + $0xd0] sm:$0xff]
  %v1520 = vld [vmem:[%s18 + $0xd8] sm:$0xff]
  %v1521 = vld [vmem:[%s18 + $0xe0] sm:$0xff]
  %v1522 = vld [vmem:[%s18 + $0xe8] sm:$0xff]
  %v1523 = vld [vmem:[%s18 + $0xf0] sm:$0xff]
  %v1524 = vld [vmem:[%s18 + $0xf8] sm:$0xff]
  %v1525 = vld [vmem:[%s19] sm:$0x3]
  %v1527 = vlaneseq
  %v1528 = vshrl.u32 %v1527, 7
  %v1529 = vsub.s32 0, %v1528
  %v1530 = vrot.slane %v1525, %v1529
  %v1531 = vlaneseq
  %v1532 = vshrl.u32 %v1531, 7
  %v1533 = vsub.s32 1, %v1532
  %v1534 = vrot.slane %v1525, %v1533
  %v1569 = vunpack.c.l.b16 %v1493
  %v1570 = vunpack.c.h.b16 %v1493
  %v1571 = vunpack.c.l.b16 %v1494
  %v1572 = vunpack.c.h.b16 %v1494
  %v1573 = vunpack.c.l.b16 %v1495
  %v1574 = vunpack.c.h.b16 %v1495
  %v1575 = vunpack.c.l.b16 %v1496
  %v1576 = vunpack.c.h.b16 %v1496
  %v1577 = vunpack.c.l.b16 %v1497
  %v1578 = vunpack.c.h.b16 %v1497
  %v1579 = vunpack.c.l.b16 %v1498
  %v1580 = vunpack.c.h.b16 %v1498
  %v1581 = vunpack.c.l.b16 %v1499
  %v1582 = vunpack.c.h.b16 %v1499
  %v1583 = vunpack.c.l.b16 %v1500
  %v1584 = vunpack.c.h.b16 %v1500
  %v1585 = vunpack.c.l.b16 %v1501
  %v1586 = vunpack.c.h.b16 %v1501
  %v1587 = vunpack.c.l.b16 %v1502
  %v1588 = vunpack.c.h.b16 %v1502
  %v1589 = vunpack.c.l.b16 %v1503
  %v1590 = vunpack.c.h.b16 %v1503
  %v1591 = vunpack.c.l.b16 %v1504
  %v1592 = vunpack.c.h.b16 %v1504
  %v1593 = vunpack.c.l.b16 %v1505
  %v1594 = vunpack.c.h.b16 %v1505
  %v1595 = vunpack.c.l.b16 %v1506
  %v1596 = vunpack.c.h.b16 %v1506
  %v1597 = vunpack.c.l.b16 %v1507
  %v1598 = vunpack.c.h.b16 %v1507
  %v1599 = vunpack.c.l.b16 %v1508
  %v1600 = vunpack.c.h.b16 %v1508
  %v1601 = vunpack.c.l.b16 %v1509
  %v1602 = vunpack.c.h.b16 %v1509
  %v1603 = vunpack.c.l.b16 %v1510
  %v1604 = vunpack.c.h.b16 %v1510
  %v1605 = vunpack.c.l.b16 %v1511
  %v1606 = vunpack.c.h.b16 %v1511
  %v1607 = vunpack.c.l.b16 %v1512
  %v1608 = vunpack.c.h.b16 %v1512
  %v1609 = vunpack.c.l.b16 %v1513
  %v1610 = vunpack.c.h.b16 %v1513
  %v1611 = vunpack.c.l.b16 %v1514
  %v1612 = vunpack.c.h.b16 %v1514
  %v1613 = vunpack.c.l.b16 %v1515
  %v1614 = vunpack.c.h.b16 %v1515
  %v1615 = vunpack.c.l.b16 %v1516
  %v1616 = vunpack.c.h.b16 %v1516
  %v1617 = vunpack.c.l.b16 %v1517
  %v1618 = vunpack.c.h.b16 %v1517
  %v1619 = vunpack.c.l.b16 %v1518
  %v1620 = vunpack.c.h.b16 %v1518
  %v1621 = vunpack.c.l.b16 %v1519
  %v1622 = vunpack.c.h.b16 %v1519
  %v1623 = vunpack.c.l.b16 %v1520
  %v1624 = vunpack.c.h.b16 %v1520
  %v1625 = vunpack.c.l.b16 %v1521
  %v1626 = vunpack.c.h.b16 %v1521
  %v1627 = vunpack.c.l.b16 %v1522
  %v1628 = vunpack.c.h.b16 %v1522
  %v1629 = vunpack.c.l.b16 %v1523
  %v1630 = vunpack.c.h.b16 %v1523
  %v1631 = vunpack.c.l.b16 %v1524
  %v1632 = vunpack.c.h.b16 %v1524
  %v1633 = vpack.c.b16 %v1571, %v1569
  %v1634 = vpack.c.b16 %v1572, %v1570
  %v1635 = vpack.c.b16 %v1575, %v1573
  %v1636 = vpack.c.b16 %v1576, %v1574
  %v1637 = vpack.c.b16 %v1579, %v1577
  %v1638 = vpack.c.b16 %v1580, %v1578
  %v1639 = vpack.c.b16 %v1583, %v1581
  %v1640 = vpack.c.b16 %v1584, %v1582
  %v1641 = vpack.c.b16 %v1587, %v1585
  %v1642 = vpack.c.b16 %v1588, %v1586
  %v1643 = vpack.c.b16 %v1591, %v1589
  %v1644 = vpack.c.b16 %v1592, %v1590
  %v1645 = vpack.c.b16 %v1595, %v1593
  %v1646 = vpack.c.b16 %v1596, %v1594
  %v1647 = vpack.c.b16 %v1599, %v1597
  %v1648 = vpack.c.b16 %v1600, %v1598
  %v1649 = vpack.c.b16 %v1603, %v1601
  %v1650 = vpack.c.b16 %v1604, %v1602
  %v1651 = vpack.c.b16 %v1607, %v1605
  %v1652 = vpack.c.b16 %v1608, %v1606
  %v1653 = vpack.c.b16 %v1611, %v1609
  %v1654 = vpack.c.b16 %v1612, %v1610
  %v1655 = vpack.c.b16 %v1615, %v1613
  %v1656 = vpack.c.b16 %v1616, %v1614
  %v1657 = vpack.c.b16 %v1619, %v1617
  %v1658 = vpack.c.b16 %v1620, %v1618
  %v1659 = vpack.c.b16 %v1623, %v1621
  %v1660 = vpack.c.b16 %v1624, %v1622
  %v1661 = vpack.c.b16 %v1627, %v1625
  %v1662 = vpack.c.b16 %v1628, %v1626
  %v1663 = vpack.c.b16 %v1631, %v1629
  %v1664 = vpack.c.b16 %v1632, %v1630
  %1697 = vmatprep.subr.bf16.mxu0 %v1648
  %1698 = vmatpush1.bf16.msra.mxu0 %v1647
  %1699 = vmatprep.subr.bf16.mxu0 %v1646
  %1700 = vmatpush1.bf16.msra.mxu0 %v1645
  %1701 = vmatprep.subr.bf16.mxu0 %v1644
  %1702 = vmatpush1.bf16.msra.mxu0 %v1643
  %1703 = vmatprep.subr.bf16.mxu0 %v1642
  %1704 = vmatpush1.bf16.msra.mxu0 %v1641
  %1705 = vmatprep.subr.bf16.mxu0 %v1640
  %1706 = vmatpush1.bf16.msra.mxu0 %v1639
  %1707 = vmatprep.subr.bf16.mxu0 %v1638
  %1708 = vmatpush1.bf16.msra.mxu0 %v1637
  %1709 = vmatprep.subr.bf16.mxu0 %v1636
  %1710 = vmatpush1.bf16.msra.mxu0 %v1635
  %1711 = vmatprep.subr.bf16.mxu0 %v1634
  %1712 = vmatpush1.bf16.msra.mxu0 %v1633
  %1713 = vmatprep.subr.bf16.mxu0 %v1664
  %1714 = vmatpush2.bf16.msra.mxu0 %v1663
  %1715 = vmatprep.subr.bf16.mxu0 %v1662
  %1716 = vmatpush2.bf16.msra.mxu0 %v1661
  %1717 = vmatprep.subr.bf16.mxu0 %v1660
  %1718 = vmatpush2.bf16.msra.mxu0 %v1659
  %1719 = vmatprep.subr.bf16.mxu0 %v1658
  %1720 = vmatpush2.bf16.msra.mxu0 %v1657
  %1721 = vmatprep.subr.bf16.mxu0 %v1656
  %1722 = vmatpush2.bf16.msra.mxu0 %v1655
  %1723 = vmatprep.subr.bf16.mxu0 %v1654
  %1724 = vmatpush2.bf16.msra.mxu0 %v1653
  %1725 = vmatprep.subr.bf16.mxu0 %v1652
  %1726 = vmatpush2.bf16.msra.mxu0 %v1651
  %1727 = vmatprep.subr.bf16.mxu0 %v1650
  %1728 = vmatpush2.bf16.msra.mxu0 %v1649
  %1729 = vmatprep.mubr.bf16.mxu0 %v1492
  %1730 = vmatmul.mubr.bf16.gmra.mxu0 %v1491
  %v1731 = vpop.f32.mrf.mxu0
  %v1732 = vadd.f32 %v1530, %v1731
  %v1733 = vpop.f32.mrf.mxu0
  %v1734 = vadd.f32 %v1534, %v1733
  %v1735 = vpop.f32.mrf.mxu0
  %v1736 = vadd.f32 %v1530, %v1735
  %v1737 = vpop.f32.mrf.mxu0
  %v1738 = vadd.f32 %v1534, %v1737
  %1739 = vdwg.mxu0
  %vm1740 = vcmp.gt.f32.partialorder %v1732, 0.0
  %vm1741 = vcmp.gt.f32.partialorder %v1734, 0.0
  %vm1742 = vcmp.gt.f32.partialorder %v1736, 0.0
  %vm1743 = vcmp.gt.f32.partialorder %v1738, 0.0
  %v1744 = vmul.f32 %v1732, 0.01
  %v1745 = vmul.f32 %v1734, 0.01
  %v1746 = vmul.f32 %v1736, 0.01
  %v1747 = vmul.f32 %v1738, 0.01
  %v1748 = vsel %vm1740, %v1732, %v1744
  %v1749 = vsel %vm1741, %v1734, %v1745
  %v1750 = vsel %vm1742, %v1736, %v1746
  %v1751 = vsel %vm1743, %v1738, %v1747
  %v1752 = vpack.c.bf16 %v1750, %v1748
  %v1753 = vpack.c.bf16 %v1751, %v1749
  %v1754 = vld [vmem:[%s20] sm:$0xff]
  %v1755 = vld [vmem:[%s20 + $0x8] sm:$0xff]
  %v1756 = vld [vmem:[%s20 + $0x10] sm:$0xff]
  %v1757 = vld [vmem:[%s20 + $0x18] sm:$0xff]
  %v1758 = vld [vmem:[%s20 + $0x20] sm:$0xff]
  %v1759 = vld [vmem:[%s20 + $0x28] sm:$0xff]
  %v1760 = vld [vmem:[%s20 + $0x30] sm:$0xff]
  %v1761 = vld [vmem:[%s20 + $0x38] sm:$0xff]
  %v1762 = vld [vmem:[%s20 + $0x40] sm:$0xff]
  %v1763 = vld [vmem:[%s20 + $0x48] sm:$0xff]
  %v1764 = vld [vmem:[%s20 + $0x50] sm:$0xff]
  %v1765 = vld [vmem:[%s20 + $0x58] sm:$0xff]
  %v1766 = vld [vmem:[%s20 + $0x60] sm:$0xff]
  %v1767 = vld [vmem:[%s20 + $0x68] sm:$0xff]
  %v1768 = vld [vmem:[%s20 + $0x70] sm:$0xff]
  %v1769 = vld [vmem:[%s20 + $0x78] sm:$0xff]
  %v1770 = vld [vmem:[%s20 + $0x80] sm:$0xff]
  %v1771 = vld [vmem:[%s20 + $0x88] sm:$0xff]
  %v1772 = vld [vmem:[%s20 + $0x90] sm:$0xff]
  %v1773 = vld [vmem:[%s20 + $0x98] sm:$0xff]
  %v1774 = vld [vmem:[%s20 + $0xa0] sm:$0xff]
  %v1775 = vld [vmem:[%s20 + $0xa8] sm:$0xff]
  %v1776 = vld [vmem:[%s20 + $0xb0] sm:$0xff]
  %v1777 = vld [vmem:[%s20 + $0xb8] sm:$0xff]
  %v1778 = vld [vmem:[%s20 + $0xc0] sm:$0xff]
  %v1779 = vld [vmem:[%s20 + $0xc8] sm:$0xff]
  %v1780 = vld [vmem:[%s20 + $0xd0] sm:$0xff]
  %v1781 = vld [vmem:[%s20 + $0xd8] sm:$0xff]
  %v1782 = vld [vmem:[%s20 + $0xe0] sm:$0xff]
  %v1783 = vld [vmem:[%s20 + $0xe8] sm:$0xff]
  %v1784 = vld [vmem:[%s20 + $0xf0] sm:$0xff]
  %v1785 = vld [vmem:[%s20 + $0xf8] sm:$0xff]
  %v1786 = vld [vmem:[%s21] sm:$0x3]
  %v1788 = vlaneseq
  %v1789 = vshrl.u32 %v1788, 7
  %v1790 = vsub.s32 0, %v1789
  %v1791 = vrot.slane %v1786, %v1790
  %v1792 = vlaneseq
  %v1793 = vshrl.u32 %v1792, 7
  %v1794 = vsub.s32 1, %v1793
  %v1795 = vrot.slane %v1786, %v1794
  %v1830 = vunpack.c.l.b16 %v1754
  %v1831 = vunpack.c.h.b16 %v1754
  %v1832 = vunpack.c.l.b16 %v1755
  %v1833 = vunpack.c.h.b16 %v1755
  %v1834 = vunpack.c.l.b16 %v1756
  %v1835 = vunpack.c.h.b16 %v1756
  %v1836 = vunpack.c.l.b16 %v1757
  %v1837 = vunpack.c.h.b16 %v1757
  %v1838 = vunpack.c.l.b16 %v1758
  %v1839 = vunpack.c.h.b16 %v1758
  %v1840 = vunpack.c.l.b16 %v1759
  %v1841 = vunpack.c.h.b16 %v1759
  %v1842 = vunpack.c.l.b16 %v1760
  %v1843 = vunpack.c.h.b16 %v1760
  %v1844 = vunpack.c.l.b16 %v1761
  %v1845 = vunpack.c.h.b16 %v1761
  %v1846 = vunpack.c.l.b16 %v1762
  %v1847 = vunpack.c.h.b16 %v1762
  %v1848 = vunpack.c.l.b16 %v1763
  %v1849 = vunpack.c.h.b16 %v1763
  %v1850 = vunpack.c.l.b16 %v1764
  %v1851 = vunpack.c.h.b16 %v1764
  %v1852 = vunpack.c.l.b16 %v1765
  %v1853 = vunpack.c.h.b16 %v1765
  %v1854 = vunpack.c.l.b16 %v1766
  %v1855 = vunpack.c.h.b16 %v1766
  %v1856 = vunpack.c.l.b16 %v1767
  %v1857 = vunpack.c.h.b16 %v1767
  %v1858 = vunpack.c.l.b16 %v1768
  %v1859 = vunpack.c.h.b16 %v1768
  %v1860 = vunpack.c.l.b16 %v1769
  %v1861 = vunpack.c.h.b16 %v1769
  %v1862 = vunpack.c.l.b16 %v1770
  %v1863 = vunpack.c.h.b16 %v1770
  %v1864 = vunpack.c.l.b16 %v1771
  %v1865 = vunpack.c.h.b16 %v1771
  %v1866 = vunpack.c.l.b16 %v1772
  %v1867 = vunpack.c.h.b16 %v1772
  %v1868 = vunpack.c.l.b16 %v1773
  %v1869 = vunpack.c.h.b16 %v1773
  %v1870 = vunpack.c.l.b16 %v1774
  %v1871 = vunpack.c.h.b16 %v1774
  %v1872 = vunpack.c.l.b16 %v1775
  %v1873 = vunpack.c.h.b16 %v1775
  %v1874 = vunpack.c.l.b16 %v1776
  %v1875 = vunpack.c.h.b16 %v1776
  %v1876 = vunpack.c.l.b16 %v1777
  %v1877 = vunpack.c.h.b16 %v1777
  %v1878 = vunpack.c.l.b16 %v1778
  %v1879 = vunpack.c.h.b16 %v1778
  %v1880 = vunpack.c.l.b16 %v1779
  %v1881 = vunpack.c.h.b16 %v1779
  %v1882 = vunpack.c.l.b16 %v1780
  %v1883 = vunpack.c.h.b16 %v1780
  %v1884 = vunpack.c.l.b16 %v1781
  %v1885 = vunpack.c.h.b16 %v1781
  %v1886 = vunpack.c.l.b16 %v1782
  %v1887 = vunpack.c.h.b16 %v1782
  %v1888 = vunpack.c.l.b16 %v1783
  %v1889 = vunpack.c.h.b16 %v1783
  %v1890 = vunpack.c.l.b16 %v1784
  %v1891 = vunpack.c.h.b16 %v1784
  %v1892 = vunpack.c.l.b16 %v1785
  %v1893 = vunpack.c.h.b16 %v1785
  %v1894 = vpack.c.b16 %v1832, %v1830
  %v1895 = vpack.c.b16 %v1833, %v1831
  %v1896 = vpack.c.b16 %v1836, %v1834
  %v1897 = vpack.c.b16 %v1837, %v1835
  %v1898 = vpack.c.b16 %v1840, %v1838
  %v1899 = vpack.c.b16 %v1841, %v1839
  %v1900 = vpack.c.b16 %v1844, %v1842
  %v1901 = vpack.c.b16 %v1845, %v1843
  %v1902 = vpack.c.b16 %v1848, %v1846
  %v1903 = vpack.c.b16 %v1849, %v1847
  %v1904 = vpack.c.b16 %v1852, %v1850
  %v1905 = vpack.c.b16 %v1853, %v1851
  %v1906 = vpack.c.b16 %v1856, %v1854
  %v1907 = vpack.c.b16 %v1857, %v1855
  %v1908 = vpack.c.b16 %v1860, %v1858
  %v1909 = vpack.c.b16 %v1861, %v1859
  %v1910 = vpack.c.b16 %v1864, %v1862
  %v1911 = vpack.c.b16 %v1865, %v1863
  %v1912 = vpack.c.b16 %v1868, %v1866
  %v1913 = vpack.c.b16 %v1869, %v1867
  %v1914 = vpack.c.b16 %v1872, %v1870
  %v1915 = vpack.c.b16 %v1873, %v1871
  %v1916 = vpack.c.b16 %v1876, %v1874
  %v1917 = vpack.c.b16 %v1877, %v1875
  %v1918 = vpack.c.b16 %v1880, %v1878
  %v1919 = vpack.c.b16 %v1881, %v1879
  %v1920 = vpack.c.b16 %v1884, %v1882
  %v1921 = vpack.c.b16 %v1885, %v1883
  %v1922 = vpack.c.b16 %v1888, %v1886
  %v1923 = vpack.c.b16 %v1889, %v1887
  %v1924 = vpack.c.b16 %v1892, %v1890
  %v1925 = vpack.c.b16 %v1893, %v1891
  %1958 = vmatprep.subr.bf16.mxu0 %v1909
  %1959 = vmatpush1.bf16.msra.mxu0 %v1908
  %1960 = vmatprep.subr.bf16.mxu0 %v1907
  %1961 = vmatpush1.bf16.msra.mxu0 %v1906
  %1962 = vmatprep.subr.bf16.mxu0 %v1905
  %1963 = vmatpush1.bf16.msra.mxu0 %v1904
  %1964 = vmatprep.subr.bf16.mxu0 %v1903
  %1965 = vmatpush1.bf16.msra.mxu0 %v1902
  %1966 = vmatprep.subr.bf16.mxu0 %v1901
  %1967 = vmatpush1.bf16.msra.mxu0 %v1900
  %1968 = vmatprep.subr.bf16.mxu0 %v1899
  %1969 = vmatpush1.bf16.msra.mxu0 %v1898
  %1970 = vmatprep.subr.bf16.mxu0 %v1897
  %1971 = vmatpush1.bf16.msra.mxu0 %v1896
  %1972 = vmatprep.subr.bf16.mxu0 %v1895
  %1973 = vmatpush1.bf16.msra.mxu0 %v1894
  %1974 = vmatprep.subr.bf16.mxu0 %v1925
  %1975 = vmatpush2.bf16.msra.mxu0 %v1924
  %1976 = vmatprep.subr.bf16.mxu0 %v1923
  %1977 = vmatpush2.bf16.msra.mxu0 %v1922
  %1978 = vmatprep.subr.bf16.mxu0 %v1921
  %1979 = vmatpush2.bf16.msra.mxu0 %v1920
  %1980 = vmatprep.subr.bf16.mxu0 %v1919
  %1981 = vmatpush2.bf16.msra.mxu0 %v1918
  %1982 = vmatprep.subr.bf16.mxu0 %v1917
  %1983 = vmatpush2.bf16.msra.mxu0 %v1916
  %1984 = vmatprep.subr.bf16.mxu0 %v1915
  %1985 = vmatpush2.bf16.msra.mxu0 %v1914
  %1986 = vmatprep.subr.bf16.mxu0 %v1913
  %1987 = vmatpush2.bf16.msra.mxu0 %v1912
  %1988 = vmatprep.subr.bf16.mxu0 %v1911
  %1989 = vmatpush2.bf16.msra.mxu0 %v1910
  %1990 = vmatprep.mubr.bf16.mxu0 %v1753
  %1991 = vmatmul.mubr.bf16.gmra.mxu0 %v1752
  %v1992 = vpop.f32.mrf.mxu0
  %v1993 = vadd.f32 %v1791, %v1992
  %v1994 = vpop.f32.mrf.mxu0
  %v1995 = vadd.f32 %v1795, %v1994
  %v1996 = vpop.f32.mrf.mxu0
  %v1997 = vadd.f32 %v1791, %v1996
  %v1998 = vpop.f32.mrf.mxu0
  %v1999 = vadd.f32 %v1795, %v1998
  %2000 = vdwg.mxu0
  %v2001 = vtanh.pop %v1993
  %v2002 = vtanh.pop %v1997
  %v2003 = vmul.f32 %v2001, 1.442695
  %v2004 = vpow.pop %v2003
  %v2005 = vmul.f32 %v2002, 1.442695
  %v2006 = vpow.pop %v2005
  %v2007 = vmul.f32 %v97, %v2004
  %v2008 = vmul.f32 %v98, %v2006
  %v2009 = vadd.f32 %v2007, %v1995
  %v2010 = vadd.f32 %v2008, %v1999
  %2011 = vadd.xlane.f32.xlu0 %v2001
  %v2012 = vpop.xlane.xlu0 %2011
  %2013 = vadd.xlane.f32.xlu0 %v2002
  %v2014 = vpop.xlane.xlu0 %2013
  %v2015 = vld [vmem:[%s22] sm:$0xff]
  %v2016 = vld [vmem:[%s22 + $0x8] sm:$0xff]
  %v2017 = vld [vmem:[%s22 + $0x10] sm:$0xff]
  %v2018 = vld [vmem:[%s22 + $0x18] sm:$0xff]
  %v2019 = vld [vmem:[%s22 + $0x20] sm:$0xff]
  %v2020 = vld [vmem:[%s22 + $0x28] sm:$0xff]
  %v2021 = vld [vmem:[%s22 + $0x30] sm:$0xff]
  %v2022 = vld [vmem:[%s22 + $0x38] sm:$0xff]
  %v2023 = vld [vmem:[%s22 + $0x40] sm:$0xff]
  %v2024 = vld [vmem:[%s22 + $0x48] sm:$0xff]
  %v2025 = vld [vmem:[%s22 + $0x50] sm:$0xff]
  %v2026 = vld [vmem:[%s22 + $0x58] sm:$0xff]
  %v2027 = vld [vmem:[%s22 + $0x60] sm:$0xff]
  %v2028 = vld [vmem:[%s22 + $0x68] sm:$0xff]
  %v2029 = vld [vmem:[%s22 + $0x70] sm:$0xff]
  %v2030 = vld [vmem:[%s22 + $0x78] sm:$0xff]
  %v2031 = vld [vmem:[%s22 + $0x80] sm:$0xff]
  %v2032 = vld [vmem:[%s22 + $0x88] sm:$0xff]
  %v2033 = vld [vmem:[%s22 + $0x90] sm:$0xff]
  %v2034 = vld [vmem:[%s22 + $0x98] sm:$0xff]
  %v2035 = vld [vmem:[%s22 + $0xa0] sm:$0xff]
  %v2036 = vld [vmem:[%s22 + $0xa8] sm:$0xff]
  %v2037 = vld [vmem:[%s22 + $0xb0] sm:$0xff]
  %v2038 = vld [vmem:[%s22 + $0xb8] sm:$0xff]
  %v2039 = vld [vmem:[%s22 + $0xc0] sm:$0xff]
  %v2040 = vld [vmem:[%s22 + $0xc8] sm:$0xff]
  %v2041 = vld [vmem:[%s22 + $0xd0] sm:$0xff]
  %v2042 = vld [vmem:[%s22 + $0xd8] sm:$0xff]
  %v2043 = vld [vmem:[%s22 + $0xe0] sm:$0xff]
  %v2044 = vld [vmem:[%s22 + $0xe8] sm:$0xff]
  %v2045 = vld [vmem:[%s22 + $0xf0] sm:$0xff]
  %v2046 = vld [vmem:[%s22 + $0xf8] sm:$0xff]
  %2047 = vmatprep.subr.mxu0 0.0
  %2048 = vmatpush1.msra.mxu0 %v2030
  %2049 = vmatprep.subr.mxu0 0.0
  %2050 = vmatpush1.msra.mxu0 %v2029
  %2051 = vmatprep.subr.mxu0 0.0
  %2052 = vmatpush1.msra.mxu0 %v2028
  %2053 = vmatprep.subr.mxu0 0.0
  %2054 = vmatpush1.msra.mxu0 %v2027
  %2055 = vmatprep.subr.mxu0 0.0
  %2056 = vmatpush1.msra.mxu0 %v2026
  %2057 = vmatprep.subr.mxu0 0.0
  %2058 = vmatpush1.msra.mxu0 %v2025
  %2059 = vmatprep.subr.mxu0 0.0
  %2060 = vmatpush1.msra.mxu0 %v2024
  %2061 = vmatprep.subr.mxu0 0.0
  %2062 = vmatpush1.msra.mxu0 %v2023
  %2063 = vmatprep.subr.mxu0 0.0
  %2064 = vmatpush1.msra.mxu0 %v2022
  %2065 = vmatprep.subr.mxu0 0.0
  %2066 = vmatpush1.msra.mxu0 %v2021
  %2067 = vmatprep.subr.mxu0 0.0
  %2068 = vmatpush1.msra.mxu0 %v2020
  %2069 = vmatprep.subr.mxu0 0.0
  %2070 = vmatpush1.msra.mxu0 %v2019
  %2071 = vmatprep.subr.mxu0 0.0
  %2072 = vmatpush1.msra.mxu0 %v2018
  %2073 = vmatprep.subr.mxu0 0.0
  %2074 = vmatpush1.msra.mxu0 %v2017
  %2075 = vmatprep.subr.mxu0 0.0
  %2076 = vmatpush1.msra.mxu0 %v2016
  %2077 = vmatprep.subr.mxu0 0.0
  %2078 = vmatpush1.msra.mxu0 %v2015
  %2079 = vmatprep.subr.mxu0 0.0
  %2080 = vmatpush2.msra.mxu0 %v2046
  %2081 = vmatprep.subr.mxu0 0.0
  %2082 = vmatpush2.msra.mxu0 %v2045
  %2083 = vmatprep.subr.mxu0 0.0
  %2084 = vmatpush2.msra.mxu0 %v2044
  %2085 = vmatprep.subr.mxu0 0.0
  %2086 = vmatpush2.msra.mxu0 %v2043
  %2087 = vmatprep.subr.mxu0 0.0
  %2088 = vmatpush2.msra.mxu0 %v2042
  %2089 = vmatprep.subr.mxu0 0.0
  %2090 = vmatpush2.msra.mxu0 %v2041
  %2091 = vmatprep.subr.mxu0 0.0
  %2092 = vmatpush2.msra.mxu0 %v2040
  %2093 = vmatprep.subr.mxu0 0.0
  %2094 = vmatpush2.msra.mxu0 %v2039
  %2095 = vmatprep.subr.mxu0 0.0
  %2096 = vmatpush2.msra.mxu0 %v2038
  %2097 = vmatprep.subr.mxu0 0.0
  %2098 = vmatpush2.msra.mxu0 %v2037
  %2099 = vmatprep.subr.mxu0 0.0
  %2100 = vmatpush2.msra.mxu0 %v2036
  %2101 = vmatprep.subr.mxu0 0.0
  %2102 = vmatpush2.msra.mxu0 %v2035
  %2103 = vmatprep.subr.mxu0 0.0
  %2104 = vmatpush2.msra.mxu0 %v2034
  %2105 = vmatprep.subr.mxu0 0.0
  %2106 = vmatpush2.msra.mxu0 %v2033
  %2107 = vmatprep.subr.mxu0 0.0
  %2108 = vmatpush2.msra.mxu0 %v2032
  %2109 = vmatprep.subr.mxu0 0.0
  %2110 = vmatpush2.msra.mxu0 %v2031
  %2111 = vmatprep.mubr.f32.mxu0 %v2009
  %2112 = vmatmul.mubr.f32.gmra.mxu0 %v1060
  %v2113 = vpop.f32.mrf.mxu0
  %v2114 = vadd.f32 0.0, %v2113
  %v2115 = vpop.f32.mrf.mxu0
  %2116 = vmatprep.mubr.f32.mxu0 %v2010
  %2117 = vmatmul.mubr.f32.gmra.mxu0 %v1061
  %v2118 = vpop.f32.mrf.mxu0
  %v2119 = vadd.f32 0.0, %v2118
  %v2120 = vpop.f32.mrf.mxu0
  %2121 = vdwg.mxu0
  %2122 = vst [vmem:[%s23] sm:$0xff] %v2114
  %2123 = vst [vmem:[%s23 + $0x8] sm:$0xff] %v2119
  %v2124 = vadd.f32 %v1063, %v2012
  %v2125 = vadd.f32 %v1065, %v2014
  %2126 = vst [vmem:[%s24] sm:$0xff] %v2124
  %2127 = vst [vmem:[%s24 + $0x8] sm:$0xff] %v2125
  // Predicated region
  $region94: #{_flow_block_forward.1} parent=0 // pred_check
    _
  $region95: #{_flow_block_forward.1} parent=0 // pred_check_branch
    %2129 = sbr.rel (0) target = $region97
  $region96: #{_flow_block_forward.1} parent=0 // pred_region
    _
  $region97: #{_flow_block_forward.1} parent=0 // pred_fallthru
    _
  // Predicated region
  $region98: #{_flow_block_forward.1} parent=0 // pred_check
    _
  $region99: #{_flow_block_forward.1} parent=0 // pred_check_branch
    %2131 = sbr.rel (0) target = $region101
  $region100: #{_flow_block_forward.1} parent=0 // pred_region
    _
  $region101: #{_flow_block_forward.1} parent=0 // pred_fallthru
    _
  // Predicated region
  $region102: #{_flow_block_forward.1} parent=0 // pred_check
    _
  $region103: #{_flow_block_forward.1} parent=0 // pred_check_branch
    %2133 = sbr.rel (0) target = $region105
  $region104: #{_flow_block_forward.1} parent=0 // pred_region
    _
  $region105: #{_flow_block_forward.1} parent=0 // pred_fallthru
    _
  // Predicated region
  $region106: #{_flow_block_forward.1} parent=0 // pred_check
    _
  $region107: #{_flow_block_forward.1} parent=0 // pred_check_branch
    %2135 = sbr.rel (0) target = $region109
  $region108: #{_flow_block_forward.1} parent=0 // pred_region
    _
  $region109: #{_flow_block_forward.1} parent=0 // pred_fallthru
    _

</llo_original>
